<compile_context>
chip_gen: v5e
topology: v5e:2x2
jax: 0.10.0
libtpu: 0.0.40
codegen_flags: <defaults>
</compile_context>

<pallas_src>
import functools

import jax
import jax.numpy as jnp
from jax import lax
from jax.experimental import pallas as pl
from jax.experimental.pallas import tpu as pltpu


_LANE = 128
_SUBLANE = 8


def _round_up(x, m):
    return ((x + m - 1) // m) * m


def _cdiv(a, b):
    return (a + b - 1) // b


def _vmem_limit_bytes():
    """Generation-aware VMEM budget: ~0.75x capacity (48 MiB v7x, 96 MiB v5e/v6e)."""
    try:
        cap = int(pltpu.get_tpu_info().vmem_capacity_bytes)
    except Exception:  # hardware query unavailable -> conservative (v7x) default
        cap = 64 * 1024 * 1024
    return int(0.75 * cap)


def _pad_to(a, shape):
    pads = [(0, t - s) for s, t in zip(a.shape, shape)]
    if all(p == (0, 0) for p in pads):
        return a
    return jnp.pad(a, pads)


def _mlp_kernel(hidden_per_step, residual_start, residual_end,
                x_ref, w1_ref, b1_ref, wh_ref, bh_ref, wf_ref, bf_ref,
                o_ref, acc_ref):
    """One (row-tile, layer-block) grid point.

    acc_ref carries the pre-ReLU residual stream `out` (f32) across the
    layer-block axis (usually of size 1 -> everything fused in one step).
    x is DMA'd once per row tile; o is flushed once at the last block.
    """
    k = pl.program_id(1)

    # --- first block: out = relu(lin1(x)) (+ x if residual_start) ----------
    @pl.when(k == 0)
    def _init():
        x = x_ref[...]
        out = jnp.dot(x.astype(w1_ref.dtype), w1_ref[...],
                      preferred_element_type=jnp.float32)
        out = out + b1_ref[...].astype(jnp.float32)
        out = jnp.maximum(out, 0.0)
        if residual_start:
            out = out + x.astype(jnp.float32)
        acc_ref[...] = out

    # --- hidden residual layers resident in VMEM for this block ------------
    if hidden_per_step > 0:
        out = acc_ref[...]

        def layer(out, w, b):
            h = jnp.dot(jnp.maximum(out, 0.0).astype(w.dtype), w,
                        preferred_element_type=jnp.float32)
            h = h + b.astype(jnp.float32)
            return out + h

        if hidden_per_step <= 16:
            for l in range(hidden_per_step):          # static, unrolled
                out = layer(out, wh_ref[l], bh_ref[l])
        else:
            out = lax.fori_loop(
                0, hidden_per_step,
                lambda l, o: layer(o, wh_ref[l], bh_ref[l]),
                out)
        acc_ref[...] = out

    # --- last block: final = lin_final(relu(out)) (+ out if residual_end) --
    @pl.when(k == pl.num_programs(1) - 1)
    def _final():
        out = acc_ref[...]
        final = jnp.dot(jnp.maximum(out, 0.0).astype(wf_ref.dtype), wf_ref[...],
                        preferred_element_type=jnp.float32)
        final = final + bf_ref[...].astype(jnp.float32)
        if residual_end:
            final = final + out
        o_ref[...] = final.astype(o_ref.dtype)


def init_mlp_params(key, dim_in, dim_out, width, nb_layers, dtype=jnp.bfloat16):
    """Deterministic (PRNGKey-driven) param init; shapes match nn.Linear.

    bf16 by default so the MXU runs native bf16 passes (f32 accumulation
    happens inside the kernel).
    """
    n_hidden = max(nb_layers - 2, 0)
    keys = jax.random.split(key, 3 + 2 * max(n_hidden, 1))

    def lin(k, fan_in, fan_out):
        bound = 1.0 / jnp.sqrt(jnp.float32(fan_in))
        kw, kb = jax.random.split(k)
        w = jax.random.uniform(kw, (fan_in, fan_out), dtype, -bound, bound)
        b = jax.random.uniform(kb, (1, fan_out), dtype, -bound, bound)
        return w, b

    w1, b1 = lin(keys[0], dim_in, width)
    if n_hidden > 0:
        whs, bhs = [], []
        for i in range(n_hidden):
            w, b = lin(keys[1 + i], width, width)
            whs.append(w)
            bhs.append(b)
        wh = jnp.stack(whs)                       # (n_hidden, width, width)
        bh = jnp.stack(bhs)                       # (n_hidden, 1, width)
    else:
        # Dummy (unused, all-zero => no-op) layer so the kernel signature stays fixed.
        wh = jnp.zeros((1, width, width), dtype)
        bh = jnp.zeros((1, 1, width), dtype)
    wf, bf = lin(keys[-1], width, dim_out)
    return dict(w1=w1, b1=b1, wh=wh, bh=bh, wf=wf, bf=bf, n_hidden=n_hidden)


def mlp_forward(x, params, dim_in, dim_out, width):
    n_hidden = int(params["n_hidden"])
    residual_start = (dim_in == width)
    residual_end = (dim_out == width)

    lead = x.shape[:-1]
    M = 1
    for d in lead:
        M *= d
    x2 = x.reshape(M, dim_in)

    # Lane-pad feature dims to multiples of 128 (full-lane vld/vst, clean MXU feed).
    dim_in_p = _round_up(max(dim_in, _LANE), _LANE)
    width_p = _round_up(max(width, _LANE), _LANE)
    dim_out_p = _round_up(max(dim_out, _LANE), _LANE)

    pdt = params["w1"].dtype
    p_item = jnp.dtype(pdt).itemsize
    x_item = jnp.dtype(x.dtype).itemsize

    # ---------------- VMEM budget & tiling ---------------------------------
    vmem_limit = _vmem_limit_bytes()
    budget = int(0.85 * vmem_limit)
    # Fixed weights & biases (double-buffered by the pipeline).
    fixed_bytes = 2 * (dim_in_p * width_p + width_p
                       + width_p * dim_out_p + dim_out_p) * p_item
    # Per resident hidden layer (double-buffered).
    layer_bytes = 2 * (width_p * width_p + width_p) * p_item
    # Per row: double-buffered x and o tiles + f32 accumulator row.
    per_row = (2 * dim_in_p + 2 * dim_out_p) * x_item + 4 * width_p

    # Hidden layers resident per grid step: as many as fit next to a minimum
    # row tile.  L == n_hidden collapses the layer axis (n_blocks == 1).
    n_hidden_eff = max(n_hidden, 1)
    tm_floor = min(_round_up(min(M, 128), _SUBLANE), 2048)
    L = n_hidden_eff
    while L > 1 and fixed_bytes + L * layer_bytes + tm_floor * per_row > budget:
        L = _cdiv(L, 2)
    n_blocks = _cdiv(n_hidden_eff, L)
    n_hidden_pad = n_blocks * L          # extra layers zero-padded (no-op layers)

    # Row tile: use remaining budget, minimize padding, and keep >=2 tiles so
    # the "parallel" axis can shard across both v7x TensorCores.
    remaining = max(budget - fixed_bytes - L * layer_bytes, tm_floor * per_row)
    tm_cap = min(2048, max(_SUBLANE, (remaining // per_row) // _SUBLANE * _SUBLANE))
    n_tiles = max(_cdiv(M, tm_cap), 2 if M >= 2 * _SUBLANE else 1)
    tm = _round_up(_cdiv(M, n_tiles), _SUBLANE)
    M_pad = _round_up(M, tm)
    num_row_tiles = M_pad // tm

    # ---------------- pad inputs / params ----------------------------------
    x2 = _pad_to(x2, (M_pad, dim_in_p))
    w1 = _pad_to(params["w1"], (dim_in_p, width_p))
    b1 = _pad_to(params["b1"], (1, width_p))
    wh = _pad_to(params["wh"], (n_hidden_pad, width_p, width_p))
    bh = _pad_to(params["bh"], (n_hidden_pad, 1, width_p))
    wf = _pad_to(params["wf"], (width_p, dim_out_p))
    bf = _pad_to(params["bf"], (1, dim_out_p))

    hidden_per_step = L if n_hidden > 0 else 0
    kernel = functools.partial(_mlp_kernel, hidden_per_step,
                               residual_start, residual_end)

    # ---------------- cost estimate (padded work, actual HBM traffic) ------
    hidden_layers_for_flops = n_hidden_pad if n_hidden > 0 else 0
    flops = 2 * M_pad * (dim_in_p * width_p
                         + hidden_layers_for_flops * width_p * width_p
                         + width_p * dim_out_p)
    fixed_param_bytes = (dim_in_p * width_p + width_p
                         + width_p * dim_out_p + dim_out_p) * p_item
    hidden_param_bytes = n_hidden_pad * (width_p * width_p + width_p) * p_item
    streams = num_row_tiles if n_blocks > 1 else 1   # wh re-streamed per row tile
    bytes_accessed = ((M_pad * dim_in_p + M_pad * dim_out_p) * x_item
                      + fixed_param_bytes + hidden_param_bytes * streams)
    cost = pl.CostEstimate(flops=int(flops), transcendentals=0,
                           bytes_accessed=int(bytes_accessed))

    grid = (num_row_tiles, n_blocks)
    grid_spec = pltpu.PrefetchScalarGridSpec(
        num_scalar_prefetch=0,
        grid=grid,
        in_specs=[
            pl.BlockSpec((tm, dim_in_p), lambda i, k: (i, 0)),            # x
            pl.BlockSpec((dim_in_p, width_p), lambda i, k: (0, 0)),       # w1 (resident)
            pl.BlockSpec((1, width_p), lambda i, k: (0, 0)),              # b1
            pl.BlockSpec((L, width_p, width_p), lambda i, k: (k, 0, 0)),  # wh block
            pl.BlockSpec((L, 1, width_p), lambda i, k: (k, 0, 0)),        # bh block
            pl.BlockSpec((width_p, dim_out_p), lambda i, k: (0, 0)),      # wf (resident)
            pl.BlockSpec((1, dim_out_p), lambda i, k: (0, 0)),            # bf
        ],
        out_specs=pl.BlockSpec((tm, dim_out_p), lambda i, k: (i, 0)),
        scratch_shapes=[pltpu.VMEM((tm, width_p), jnp.float32)],
    )

    out2 = pl.pallas_call(
        kernel,
        out_shape=jax.ShapeDtypeStruct((M_pad, dim_out_p), x.dtype),
        grid_spec=grid_spec,
        compiler_params=pltpu.CompilerParams(
            dimension_semantics=("parallel", "arbitrary"),
            vmem_limit_bytes=vmem_limit),
        cost_estimate=cost,
    )(x2, w1, b1, wh, bh, wf, bf)

    out2 = out2[:M, :dim_out]
    return out2.reshape(*lead, dim_out)


def mlp_reference(x, params, dim_in, dim_out, width):
    """Plain-JAX reference mirroring the PyTorch forward (y=None path) with the
    same mixed-precision policy as the kernel (param-dtype matmul inputs, f32 acc)."""
    n_hidden = int(params["n_hidden"])
    residual_start = (dim_in == width)
    residual_end = (dim_out == width)

    def lin(a, w, b):
        return (jnp.dot(a.astype(w.dtype), w, preferred_element_type=jnp.float32)
                + b[0].astype(jnp.float32))

    xf = x.astype(jnp.float32)
    out = lin(x, params["w1"], params["b1"])
    out = jnp.maximum(out, 0.0) + (xf if residual_start else 0.0)
    for i in range(n_hidden):
        out = out + lin(jnp.maximum(out, 0.0), params["wh"][i], params["bh"][i])
    final = lin(jnp.maximum(out, 0.0), params["wf"], params["bf"])
    final = final + (out if residual_end else 0.0)
    return final.astype(x.dtype)


# TODO(synk): two-input (y) modulation paths ('+', '*', 'film') are not wired
# into this kernel; only the single-input forward (y=None) is implemented.

if __name__ == "__main__":
    key = jax.random.PRNGKey(0)
    kx, kp, kx2, kp2 = jax.random.split(key, 4)

    # Config 1: dim_in == width == dim_out -> both residual branches active,
    # 2 hidden layers fully resident in VMEM (single layer block), bf16 params
    # feeding the MXU.  M=640 -> two 320-row tiles (no row padding, both v7x
    # TensorCores usable).
    dim_in, dim_out, width, nb_layers = 128, 128, 128, 4
    batch, seq = 4, 160
    x = jax.random.normal(kx, (batch, seq, dim_in), jnp.float32)
    params = init_mlp_params(kp, dim_in, dim_out, width, nb_layers,
                             dtype=jnp.bfloat16)

    out = jax.block_until_ready(mlp_forward(x, params, dim_in, dim_out, width))
    ref = mlp_reference(x, params, dim_in, dim_out, width)
    assert out.shape == (batch, seq, dim_out)
    assert jnp.allclose(out, ref, atol=2e-2, rtol=2e-2)

    # Config 2: no residuals, nb_layers=2 (no hidden layers), f32 params,
    # non-128-aligned feature dims (96 -> 128, 64 -> 128 lane padding).
    d_in2, d_out2, w2, nl2 = 96, 64, 128, 2
    x_b = jax.random.normal(kx2, (2, 8, d_in2), jnp.float32)
    params2 = init_mlp_params(kp2, d_in2, d_out2, w2, nl2, dtype=jnp.float32)
    out_b = jax.block_until_ready(mlp_forward(x_b, params2, d_in2, d_out2, w2))
    ref_b = mlp_reference(x_b, params2, d_in2, d_out2, w2)
    assert out_b.shape == (2, 8, d_out2)
    assert jnp.allclose(out_b, ref_b, atol=5e-4, rtol=5e-4)

    print("KERNEL_OK")
</pallas_src>

<mosaic_0001>
module attributes {stable_mosaic.version = 11 : i64} {
  func.func @_mlp_kernel(%arg0: i32, %arg1: i32, %arg2: memref<320x128xf32, #tpu.memory_space<vmem>>, %arg3: memref<128x128xbf16, #tpu.memory_space<vmem>>, %arg4: memref<1x128xbf16, #tpu.memory_space<vmem>>, %arg5: memref<2x128x128xbf16, #tpu.memory_space<vmem>>, %arg6: memref<2x1x128xbf16, #tpu.memory_space<vmem>>, %arg7: memref<128x128xbf16, #tpu.memory_space<vmem>>, %arg8: memref<1x128xbf16, #tpu.memory_space<vmem>>, %arg9: memref<320x128xf32, #tpu.memory_space<vmem>>, %arg10: memref<320x128xf32, #tpu.memory_space<vmem>>) attributes {dimension_semantics = [#tpu.dimension_semantics<parallel>, #tpu.dimension_semantics<arbitrary>], iteration_bounds = array<i64: 2, 1>, scalar_prefetch = 0 : i64, scratch_operands = 1 : i64, tpu.core_type = #tpu.core_type<tc>, window_params = [{transform_indices = @transform_0, window_bounds = array<i64: 320, 128>}, {pipeline_mode = #tpu.pipeline_mode<synchronous>, transform_indices = @transform_1, window_bounds = array<i64: 128, 128>}, {pipeline_mode = #tpu.pipeline_mode<synchronous>, transform_indices = @transform_2, window_bounds = array<i64: 1, 128>}, {transform_indices = @transform_3, window_bounds = array<i64: 2, 128, 128>}, {transform_indices = @transform_4, window_bounds = array<i64: 2, 1, 128>}, {pipeline_mode = #tpu.pipeline_mode<synchronous>, transform_indices = @transform_5, window_bounds = array<i64: 128, 128>}, {pipeline_mode = #tpu.pipeline_mode<synchronous>, transform_indices = @transform_6, window_bounds = array<i64: 1, 128>}, {transform_indices = @transform_7, window_bounds = array<i64: 320, 128>}]} {
    %c0_i32 = arith.constant 0 : i32
    %0 = arith.cmpi eq, %arg1, %c0_i32 : i32
    %1 = arith.extui %0 : i1 to i32
    %c0_i32_0 = arith.constant 0 : i32
    %2 = arith.cmpi ne, %1, %c0_i32_0 : i32
    scf.if %2 {
      %c0_20 = arith.constant 0 : index
      %c0_21 = arith.constant 0 : index
      %32 = vector.load %arg2[%c0_20, %c0_21] : memref<320x128xf32, #tpu.memory_space<vmem>>, vector<320x128xf32>
      %33 = arith.truncf %32 : vector<320x128xf32> to vector<320x128xbf16>
      %c0_22 = arith.constant 0 : index
      %c0_23 = arith.constant 0 : index
      %34 = vector.load %arg3[%c0_22, %c0_23] : memref<128x128xbf16, #tpu.memory_space<vmem>>, vector<128x128xbf16>
      %cst_24 = arith.constant dense<0.000000e+00> : vector<320x128xf32>
      %35 = tpu.matmul %33, %34, %cst_24 {dimension_numbers = #tpu.dot_dimension_numbers<[1], [0], [0], [1], [0, 0, 1, 1], [], []>} : vector<320x128xbf16>, vector<128x128xbf16>, vector<320x128xf32> -> vector<320x128xf32>
      %c0_25 = arith.constant 0 : index
      %c0_26 = arith.constant 0 : index
      %36 = vector.load %arg4[%c0_25, %c0_26] : memref<1x128xbf16, #tpu.memory_space<vmem>>, vector<1x128xbf16>
      %37 = arith.extf %36 : vector<1x128xbf16> to vector<1x128xf32>
      %38 = vector.broadcast %37 : vector<1x128xf32> to vector<320x128xf32>
      %39 = arith.addf %35, %38 : vector<320x128xf32>
      %cst_27 = arith.constant 0.000000e+00 : f32
      %40 = vector.broadcast %cst_27 : f32 to vector<320x128xf32>
      %41 = arith.maximumf %39, %40 : vector<320x128xf32>
      %42 = arith.addf %41, %32 : vector<320x128xf32>
      %c0_28 = arith.constant 0 : index
      %c0_29 = arith.constant 0 : index
      %43 = vector.load %arg10[%c0_28, %c0_29] : memref<320x128xf32, #tpu.memory_space<vmem>>, vector<320x128xf32>
      tpu.vector_store %arg10[%c0_28, %c0_29], %42 {strides = array<i32>} : memref<320x128xf32, #tpu.memory_space<vmem>>, vector<320x128xf32>,
    } else {
    }
    %c0 = arith.constant 0 : index
    %c0_1 = arith.constant 0 : index
    %3 = vector.load %arg10[%c0, %c0_1] : memref<320x128xf32, #tpu.memory_space<vmem>>, vector<320x128xf32>
    %c0_2 = arith.constant 0 : index
    %c0_3 = arith.constant 0 : index
    %c0_4 = arith.constant 0 : index
    %4 = vector.load %arg5[%c0_2, %c0_3, %c0_4] : memref<2x128x128xbf16, #tpu.memory_space<vmem>>, vector<1x128x128xbf16>
    %5 = vector.shape_cast %4 : vector<1x128x128xbf16> to vector<128x128xbf16>
    %c0_5 = arith.constant 0 : index
    %c0_6 = arith.constant 0 : index
    %c0_7 = arith.constant 0 : index
    %6 = vector.load %arg6[%c0_5, %c0_6, %c0_7] : memref<2x1x128xbf16, #tpu.memory_space<vmem>>, vector<1x1x128xbf16>
    %7 = vector.shape_cast %6 : vector<1x1x128xbf16> to vector<1x128xbf16>
    %cst = arith.constant 0.000000e+00 : f32
    %8 = vector.broadcast %cst : f32 to vector<320x128xf32>
    %9 = arith.maximumf %3, %8 : vector<320x128xf32>
    %10 = arith.truncf %9 : vector<320x128xf32> to vector<320x128xbf16>
    %cst_8 = arith.constant dense<0.000000e+00> : vector<320x128xf32>
    %11 = tpu.matmul %10, %5, %cst_8 {dimension_numbers = #tpu.dot_dimension_numbers<[1], [0], [0], [1], [0, 0, 1, 1], [], []>} : vector<320x128xbf16>, vector<128x128xbf16>, vector<320x128xf32> -> vector<320x128xf32>
    %12 = arith.extf %7 : vector<1x128xbf16> to vector<1x128xf32>
    %13 = vector.broadcast %12 : vector<1x128xf32> to vector<320x128xf32>
    %14 = arith.addf %11, %13 : vector<320x128xf32>
    %15 = arith.addf %3, %14 : vector<320x128xf32>
    %c1 = arith.constant 1 : index
    %c0_9 = arith.constant 0 : index
    %c0_10 = arith.constant 0 : index
    %16 = vector.load %arg5[%c1, %c0_9, %c0_10] : memref<2x128x128xbf16, #tpu.memory_space<vmem>>, vector<1x128x128xbf16>
    %17 = vector.shape_cast %16 : vector<1x128x128xbf16> to vector<128x128xbf16>
    %c1_11 = arith.constant 1 : index
    %c0_12 = arith.constant 0 : index
    %c0_13 = arith.constant 0 : index
    %18 = vector.load %arg6[%c1_11, %c0_12, %c0_13] : memref<2x1x128xbf16, #tpu.memory_space<vmem>>, vector<1x1x128xbf16>
    %19 = vector.shape_cast %18 : vector<1x1x128xbf16> to vector<1x128xbf16>
    %cst_14 = arith.constant 0.000000e+00 : f32
    %20 = vector.broadcast %cst_14 : f32 to vector<320x128xf32>
    %21 = arith.maximumf %15, %20 : vector<320x128xf32>
    %22 = arith.truncf %21 : vector<320x128xf32> to vector<320x128xbf16>
    %cst_15 = arith.constant dense<0.000000e+00> : vector<320x128xf32>
    %23 = tpu.matmul %22, %17, %cst_15 {dimension_numbers = #tpu.dot_dimension_numbers<[1], [0], [0], [1], [0, 0, 1, 1], [], []>} : vector<320x128xbf16>, vector<128x128xbf16>, vector<320x128xf32> -> vector<320x128xf32>
    %24 = arith.extf %19 : vector<1x128xbf16> to vector<1x128xf32>
    %25 = vector.broadcast %24 : vector<1x128xf32> to vector<320x128xf32>
    %26 = arith.addf %23, %25 : vector<320x128xf32>
    %27 = arith.addf %15, %26 : vector<320x128xf32>
    %c0_16 = arith.constant 0 : index
    %c0_17 = arith.constant 0 : index
    %28 = vector.load %arg10[%c0_16, %c0_17] : memref<320x128xf32, #tpu.memory_space<vmem>>, vector<320x128xf32>
    tpu.vector_store %arg10[%c0_16, %c0_17], %27 {strides = array<i32>} : memref<320x128xf32, #tpu.memory_space<vmem>>, vector<320x128xf32>,
    %c0_i32_18 = arith.constant 0 : i32
    %29 = arith.cmpi eq, %arg1, %c0_i32_18 : i32
    %30 = arith.extui %29 : i1 to i32
    %c0_i32_19 = arith.constant 0 : i32
    %31 = arith.cmpi ne, %30, %c0_i32_19 : i32
    scf.if %31 {
      %c0_20 = arith.constant 0 : index
      %c0_21 = arith.constant 0 : index
      %32 = vector.load %arg10[%c0_20, %c0_21] : memref<320x128xf32, #tpu.memory_space<vmem>>, vector<320x128xf32>
      %cst_22 = arith.constant 0.000000e+00 : f32
      %33 = vector.broadcast %cst_22 : f32 to vector<320x128xf32>
      %34 = arith.maximumf %32, %33 : vector<320x128xf32>
      %35 = arith.truncf %34 : vector<320x128xf32> to vector<320x128xbf16>
      %c0_23 = arith.constant 0 : index
      %c0_24 = arith.constant 0 : index
      %36 = vector.load %arg7[%c0_23, %c0_24] : memref<128x128xbf16, #tpu.memory_space<vmem>>, vector<128x128xbf16>
      %cst_25 = arith.constant dense<0.000000e+00> : vector<320x128xf32>
      %37 = tpu.matmul %35, %36, %cst_25 {dimension_numbers = #tpu.dot_dimension_numbers<[1], [0], [0], [1], [0, 0, 1, 1], [], []>} : vector<320x128xbf16>, vector<128x128xbf16>, vector<320x128xf32> -> vector<320x128xf32>
      %c0_26 = arith.constant 0 : index
      %c0_27 = arith.constant 0 : index
      %38 = vector.load %arg8[%c0_26, %c0_27] : memref<1x128xbf16, #tpu.memory_space<vmem>>, vector<1x128xbf16>
      %39 = arith.extf %38 : vector<1x128xbf16> to vector<1x128xf32>
      %40 = vector.broadcast %39 : vector<1x128xf32> to vector<320x128xf32>
      %41 = arith.addf %37, %40 : vector<320x128xf32>
      %42 = arith.addf %41, %32 : vector<320x128xf32>
      %c0_28 = arith.constant 0 : index
      %c0_29 = arith.constant 0 : index
      %43 = vector.load %arg9[%c0_28, %c0_29] : memref<320x128xf32, #tpu.memory_space<vmem>>, vector<320x128xf32>
      tpu.vector_store %arg9[%c0_28, %c0_29], %42 {strides = array<i32>} : memref<320x128xf32, #tpu.memory_space<vmem>>, vector<320x128xf32>,
    } else {
    }
    return
  }
  func.func @transform_0(%arg0: i32, %arg1: i32) -> (i32, i32) {
    %c0_i32 = arith.constant 0 : i32
    %c0_i32_0 = arith.constant 0 : i32
    return %arg0, %c0_i32 : i32, i32
  }
  func.func @transform_1(%arg0: i32, %arg1: i32) -> (i32, i32) {
    %c0_i32 = arith.constant 0 : i32
    %c0_i32_0 = arith.constant 0 : i32
    %c0_i32_1 = arith.constant 0 : i32
    return %c0_i32, %c0_i32_0 : i32, i32
  }
  func.func @transform_2(%arg0: i32, %arg1: i32) -> (i32, i32) {
    %c0_i32 = arith.constant 0 : i32
    %c0_i32_0 = arith.constant 0 : i32
    %c0_i32_1 = arith.constant 0 : i32
    return %c0_i32, %c0_i32_0 : i32, i32
  }
  func.func @transform_3(%arg0: i32, %arg1: i32) -> (i32, i32, i32) {
    %c0_i32 = arith.constant 0 : i32
    %c0_i32_0 = arith.constant 0 : i32
    %c0_i32_1 = arith.constant 0 : i32
    return %arg1, %c0_i32, %c0_i32_0 : i32, i32, i32
  }
  func.func @transform_4(%arg0: i32, %arg1: i32) -> (i32, i32, i32) {
    %c0_i32 = arith.constant 0 : i32
    %c0_i32_0 = arith.constant 0 : i32
    %c0_i32_1 = arith.constant 0 : i32
    return %arg1, %c0_i32, %c0_i32_0 : i32, i32, i32
  }
  func.func @transform_5(%arg0: i32, %arg1: i32) -> (i32, i32) {
    %c0_i32 = arith.constant 0 : i32
    %c0_i32_0 = arith.constant 0 : i32
    %c0_i32_1 = arith.constant 0 : i32
    return %c0_i32, %c0_i32_0 : i32, i32
  }
  func.func @transform_6(%arg0: i32, %arg1: i32) -> (i32, i32) {
    %c0_i32 = arith.constant 0 : i32
    %c0_i32_0 = arith.constant 0 : i32
    %c0_i32_1 = arith.constant 0 : i32
    return %c0_i32, %c0_i32_0 : i32, i32
  }
  func.func @transform_7(%arg0: i32, %arg1: i32) -> (i32, i32) {
    %c0_i32 = arith.constant 0 : i32
    %c0_i32_0 = arith.constant 0 : i32
    return %arg0, %c0_i32 : i32, i32
  }
}

</mosaic_0001>

<llo_original>
// kernel: tpu_custom_call.1
$region0: #{tpu_custom_call.1}
  #allocation0 [shape = 'u32[]', space=smem, size = 0x4, offset = 0x4, fixed_abs, tag = 'smem constant byte address 0x4 - core index']
  #allocation1 [shape = 'u32[72,128]{1,0:T(1,128)}', space=vmem, size = 0x9000, scoped, tag = 'internal scratch']
  #allocation2 [shape = 'f32[320,128]{1,0:T(8,128)}', space=vmem, size = 0x28000, scoped, tag = 'scratch operand']
  %s0 = inlined_call_operand.hbm [shape: f32[640,128], index: 0, kind: input, shape index: {}]
  %s1 = inlined_call_operand.hbm [shape: bf16[128,128], index: 1, kind: input, shape index: {}]
  %s2 = inlined_call_operand.vmem [shape: bf16[1,128], index: 2, kind: input, shape index: {}]
  %s3 = inlined_call_operand.hbm [shape: bf16[2,128,128], index: 3, kind: input, shape index: {}]
  %s4 = inlined_call_operand.vmem [shape: bf16[2,1,128], index: 4, kind: input, shape index: {}]
  %s5 = inlined_call_operand.hbm [shape: bf16[128,128], index: 5, kind: input, shape index: {}]
  %s6 = inlined_call_operand.vmem [shape: bf16[1,128], index: 6, kind: input, shape index: {}]
  %s7 = inlined_call_operand.hbm [shape: f32[640,128], index: 7, kind: output, shape index: {}]
  %s8 = sld [smem:[#allocation0]]
  $region85: #{tpu_custom_call.1} parent=0
    _
  %s10 = ssub.s32 1, %s8
  %s11 = scalar_select 0, %s10, %s8
  $region1: #{tpu_custom_call.1} parent=0
    #allocation3 [shape = 'u8[327680]{0}', space=vmem, size = 0x50000, scoped, tag = 'input window, operand 0']
    #allocation4 [shape = 's32[2]{0}', space=sflag, size = 0x8, scoped, tag = 'scoped memory for tpu_custom_call.1']
    #allocation5 [shape = 's32[2]{0}', space=sflag, size = 0x8, scoped, tag = 'scoped memory for tpu_custom_call.1']
    #allocation6 [shape = 'u8[32768]{0}', space=vmem, size = 0x8000, scoped, tag = 'input window, operand 1, single buffered']
    #allocation7 [shape = 's32[1]{0}', space=sflag, size = 0x4, scoped, tag = 'scoped memory for tpu_custom_call.1']
    #allocation8 [shape = 'u8[65536]{0}', space=vmem, size = 0x10000, scoped, tag = 'input window, operand 3, single buffered']
    #allocation9 [shape = 'u8[32768]{0}', space=vmem, size = 0x8000, scoped, tag = 'input window, operand 5, single buffered']
    #allocation10 [shape = 's32[1]{0}', space=sflag, size = 0x4, scoped, tag = 'scoped memory for tpu_custom_call.1']
    #allocation11 [shape = 'u8[327680]{0}', space=vmem, size = 0x50000, scoped, tag = 'output window, operand 0']
    %12 = vsyncpa [#allocation4], 0
    %s13 = scalar_lea.sflag [#allocation4], 1
    %14 = vsyncpa %s13, 0
    %15 = vsyncpa [#allocation7], 0
    %16 = vsyncpa [#allocation10], 0
    %17 = vsyncpa [#allocation5], 0
    %s18 = scalar_lea.sflag [#allocation5], 1
    %19 = vsyncpa %s18, 0
    loop: start=0, step=1, limit=4
    $region2: #{tpu_custom_call.1} parent=1 // loop_pre_header
      _
    $region3: #{tpu_custom_call.1} parent=1 // loop_header
      %s21 = sphi 0, %s25
      %p22 = scmp.ge.s32.totalorder %s21, 4
      %s28 = sphi 0, %s40
      %s29 = sphi 0, %s36
      %s30 = sphi 0, %s28
      %s31 = sphi 0, %s29
      %s32 = sphi 0, %s30
      %s33 = sphi 0, %s31
      %s43 = sphi 0, %s45
      %s46 = sphi 0, %s43
      %s47 = sphi 0, %s46
      %s63 = sphi 0, %s47
      %s67 = sphi 0, %s67
      %s69 = sphi 0, %s67
      %s70 = sphi 0, %s69
      %s84 = sphi 0, %s70
      %s88 = sphi 0, %s88
      %s90 = sphi 0, %s88
      %s91 = sphi 0, %s90
      %s105 = sphi 0, %s91
      %s111 = sphi 0, %s113
      %s114 = sphi 0, %s111
      %s115 = sphi 0, %s114
      %s131 = sphi 0, %s115
      %s137 = sphi 0, %s139
      %s140 = sphi 0, %s137
      %s141 = sphi 0, %s140
      %s157 = sphi 0, %s141
      %s161 = sphi 0, %s161
      %s163 = sphi 0, %s161
      %s164 = sphi 0, %s163
      %s178 = sphi 0, %s164
      %s182 = sphi 0, %s182
      %s184 = sphi 0, %s182
      %s185 = sphi 0, %s184
      %s199 = sphi 0, %s185
      %s205 = sphi 0, %s207
      %s208 = sphi 0, %s205
      %s209 = sphi 0, %s208
      %s225 = sphi 0, %s209
    $region4: #{tpu_custom_call.1} parent=1 // loop_header_branch
      %24 = sbr.rel (%p22) target = $region8
    $region5: #{tpu_custom_call.1} parent=1 // loop_body
      %s26 = ssub.s32 %s21, 1
      %s27 = ssub.s32 %s21, 2
      %s34 = sadd.s32 1, %s29
      %p35 = scmp.ge.s32.totalorder %s34, 1
      %s36 = scalar_select %p35, 0, %s34
      %s37 = sadd.s32 1, %s28
      %s38 = scalar_select %p35, %s37, %s28
      %p39 = scmp.ge.s32.totalorder %s38, 2
      %s40 = scalar_select %p39, 0, %s38
      %s41 = ssub.s32 %s28, %s40
      %p42 = scmp.eq.s32.totalorder %s41, 0
      %s44 = sadd.s32 %s43, 1
      %s45 = scalar_select %p42, %s43, %s44
      %p48 = pneg %p42
      %p49 = scmp.eq.s32.totalorder %s21, 1
      %p50 = por %p48, %p49
      %p51 = scmp.ne.s32.totalorder %s43, %s46
      %p52 = scmp.eq.s32.totalorder %s21, 0
      %p53 = por %p51, %p52
      %p54 = scmp.ne.s32.totalorder %s43, %s46
      %p55 = scmp.eq.s32.totalorder %s26, 1
      %p56 = por %p54, %p55
      %p57 = scmp.ne.s32.totalorder %s46, %s47
      %p58 = scmp.eq.s32.totalorder %s26, 0
      %p59 = por %p57, %p58
      %p60 = scmp.ne.s32.totalorder %s46, %s47
      %p61 = scmp.eq.s32.totalorder %s27, 1
      %p62 = por %p60, %p61
      %p64 = scmp.ne.s32.totalorder %s47, %s63
      %p65 = scmp.eq.s32.totalorder %s27, 0
      %p66 = por %p64, %p65
      %s68 = sadd.s32 %s67, 1
      %p71 = scmp.eq.s32.totalorder %s21, 1
      %p72 = scmp.ne.s32.totalorder %s67, %s69
      %p73 = scmp.eq.s32.totalorder %s21, 0
      %p74 = por %p72, %p73
      %p75 = scmp.ne.s32.totalorder %s67, %s69
      %p76 = scmp.eq.s32.totalorder %s26, 1
      %p77 = por %p75, %p76
      %p78 = scmp.ne.s32.totalorder %s69, %s70
      %p79 = scmp.eq.s32.totalorder %s26, 0
      %p80 = por %p78, %p79
      %p81 = scmp.ne.s32.totalorder %s69, %s70
      %p82 = scmp.eq.s32.totalorder %s27, 1
      %p83 = por %p81, %p82
      %p85 = scmp.ne.s32.totalorder %s70, %s84
      %p86 = scmp.eq.s32.totalorder %s27, 0
      %p87 = por %p85, %p86
      %s89 = sadd.s32 %s88, 1
      %p92 = scmp.eq.s32.totalorder %s21, 1
      %p93 = scmp.ne.s32.totalorder %s88, %s90
      %p94 = scmp.eq.s32.totalorder %s21, 0
      %p95 = por %p93, %p94
      %p96 = scmp.ne.s32.totalorder %s88, %s90
      %p97 = scmp.eq.s32.totalorder %s26, 1
      %p98 = por %p96, %p97
      %p99 = scmp.ne.s32.totalorder %s90, %s91
      %p100 = scmp.eq.s32.totalorder %s26, 0
      %p101 = por %p99, %p100
      %p102 = scmp.ne.s32.totalorder %s90, %s91
      %p103 = scmp.eq.s32.totalorder %s27, 1
      %p104 = por %p102, %p103
      %p106 = scmp.ne.s32.totalorder %s91, %s105
      %p107 = scmp.eq.s32.totalorder %s27, 0
      %p108 = por %p106, %p107
      %s109 = ssub.s32 %s29, %s36
      %p110 = scmp.eq.s32.totalorder %s109, 0
      %s112 = sadd.s32 %s111, 1
      %s113 = scalar_select %p110, %s111, %s112
      %p116 = pneg %p110
      %p117 = scmp.eq.s32.totalorder %s21, 1
      %p118 = por %p116, %p117
      %p119 = scmp.ne.s32.totalorder %s111, %s114
      %p120 = scmp.eq.s32.totalorder %s21, 0
      %p121 = por %p119, %p120
      %p122 = scmp.ne.s32.totalorder %s111, %s114
      %p123 = scmp.eq.s32.totalorder %s26, 1
      %p124 = por %p122, %p123
      %p125 = scmp.ne.s32.totalorder %s114, %s115
      %p126 = scmp.eq.s32.totalorder %s26, 0
      %p127 = por %p125, %p126
      %p128 = scmp.ne.s32.totalorder %s114, %s115
      %p129 = scmp.eq.s32.totalorder %s27, 1
      %p130 = por %p128, %p129
      %p132 = scmp.ne.s32.totalorder %s115, %s131
      %p133 = scmp.eq.s32.totalorder %s27, 0
      %p134 = por %p132, %p133
      %s135 = ssub.s32 %s29, %s36
      %p136 = scmp.eq.s32.totalorder %s135, 0
      %s138 = sadd.s32 %s137, 1
      %s139 = scalar_select %p136, %s137, %s138
      %p142 = pneg %p136
      %p143 = scmp.eq.s32.totalorder %s21, 1
      %p144 = por %p142, %p143
      %p145 = scmp.ne.s32.totalorder %s137, %s140
      %p146 = scmp.eq.s32.totalorder %s21, 0
      %p147 = por %p145, %p146
      %p148 = scmp.ne.s32.totalorder %s137, %s140
      %p149 = scmp.eq.s32.totalorder %s26, 1
      %p150 = por %p148, %p149
      %p151 = scmp.ne.s32.totalorder %s140, %s141
      %p152 = scmp.eq.s32.totalorder %s26, 0
      %p153 = por %p151, %p152
      %p154 = scmp.ne.s32.totalorder %s140, %s141
      %p155 = scmp.eq.s32.totalorder %s27, 1
      %p156 = por %p154, %p155
      %p158 = scmp.ne.s32.totalorder %s141, %s157
      %p159 = scmp.eq.s32.totalorder %s27, 0
      %p160 = por %p158, %p159
      %s162 = sadd.s32 %s161, 1
      %p165 = scmp.eq.s32.totalorder %s21, 1
      %p166 = scmp.ne.s32.totalorder %s161, %s163
      %p167 = scmp.eq.s32.totalorder %s21, 0
      %p168 = por %p166, %p167
      %p169 = scmp.ne.s32.totalorder %s161, %s163
      %p170 = scmp.eq.s32.totalorder %s26, 1
      %p171 = por %p169, %p170
      %p172 = scmp.ne.s32.totalorder %s163, %s164
      %p173 = scmp.eq.s32.totalorder %s26, 0
      %p174 = por %p172, %p173
      %p175 = scmp.ne.s32.totalorder %s163, %s164
      %p176 = scmp.eq.s32.totalorder %s27, 1
      %p177 = por %p175, %p176
      %p179 = scmp.ne.s32.totalorder %s164, %s178
      %p180 = scmp.eq.s32.totalorder %s27, 0
      %p181 = por %p179, %p180
      %s183 = sadd.s32 %s182, 1
      %p186 = scmp.eq.s32.totalorder %s21, 1
      %p187 = scmp.ne.s32.totalorder %s182, %s184
      %p188 = scmp.eq.s32.totalorder %s21, 0
      %p189 = por %p187, %p188
      %p190 = scmp.ne.s32.totalorder %s182, %s184
      %p191 = scmp.eq.s32.totalorder %s26, 1
      %p192 = por %p190, %p191
      %p193 = scmp.ne.s32.totalorder %s184, %s185
      %p194 = scmp.eq.s32.totalorder %s26, 0
      %p195 = por %p193, %p194
      %p196 = scmp.ne.s32.totalorder %s184, %s185
      %p197 = scmp.eq.s32.totalorder %s27, 1
      %p198 = por %p196, %p197
      %p200 = scmp.ne.s32.totalorder %s185, %s199
      %p201 = scmp.eq.s32.totalorder %s27, 0
      %p202 = por %p200, %p201
      %s203 = ssub.s32 %s28, %s40
      %p204 = scmp.eq.s32.totalorder %s203, 0
      %s206 = sadd.s32 %s205, 1
      %s207 = scalar_select %p204, %s205, %s206
      %p210 = pneg %p204
      %p211 = scmp.eq.s32.totalorder %s21, 1
      %p212 = por %p210, %p211
      %p213 = scmp.ne.s32.totalorder %s205, %s208
      %p214 = scmp.eq.s32.totalorder %s21, 0
      %p215 = por %p213, %p214
      %p216 = scmp.ne.s32.totalorder %s205, %s208
      %p217 = scmp.eq.s32.totalorder %s26, 1
      %p218 = por %p216, %p217
      %p219 = scmp.ne.s32.totalorder %s208, %s209
      %p220 = scmp.eq.s32.totalorder %s26, 0
      %p221 = por %p219, %p220
      %p222 = scmp.ne.s32.totalorder %s208, %s209
      %p223 = scmp.eq.s32.totalorder %s27, 1
      %p224 = por %p222, %p223
      %p226 = scmp.ne.s32.totalorder %s209, %s225
      %p227 = scmp.eq.s32.totalorder %s27, 0
      %p228 = por %p226, %p227
      %p229 = scmp.le.s32.totalorder 1, %s21
      %p230 = scmp.lt.s32.totalorder %s21, 3
      %p231 = pnand %p229, %p230
      %p232 = pneg %p231
      // Predicated region
      $region9: #{tpu_custom_call.1} parent=5 // pred_check
        _
      $region10: #{tpu_custom_call.1} parent=5 // pred_check_branch
        %234 = sbr.rel (%p231) target = $region12
      $region11: #{tpu_custom_call.1} parent=5 // pred_region
        %s235 = ssub.s32 %s21, 1
        // Predicated region
        $region13: #{tpu_custom_call.1} parent=11 // pred_check
          %p236 = pneg %p80
        $region14: #{tpu_custom_call.1} parent=11 // pred_check_branch
          %238 = sbr.rel (%p236) target = $region16
        $region15: #{tpu_custom_call.1} parent=11 // pred_region
          %240 = vsyncadd [#allocation7], 0
          %s241 = sshll.u32 %s1, 4
          %s242 = int_to_ptr.hbm [resolvable:$true] %s241
          %s243 = sshll.u32 [#allocation6], 4
          %s244 = int_to_ptr.vmem [resolvable:$true] %s243
          %249 = dma.hbm_to_vmem [thread:$0]  %s242, 1024, %s244, [#allocation7], 64, 64, 4
        $region16: #{tpu_custom_call.1} parent=11 // pred_fallthru
          _
        // Predicated region
        $region17: #{tpu_custom_call.1} parent=11 // pred_check
          %p250 = pneg %p101
        $region18: #{tpu_custom_call.1} parent=11 // pred_check_branch
          %252 = sbr.rel (%p250) target = $region20
        $region19: #{tpu_custom_call.1} parent=11 // pred_region
          _
        $region20: #{tpu_custom_call.1} parent=11 // pred_fallthru
          _
        // Predicated region
        $region21: #{tpu_custom_call.1} parent=11 // pred_check
          %p253 = pneg %p127
        $region22: #{tpu_custom_call.1} parent=11 // pred_check_branch
          %255 = sbr.rel (%p253) target = $region24
        $region23: #{tpu_custom_call.1} parent=11 // pred_region
          %s256 = smul.u32 2, %s31
          %258 = vsyncadd [#allocation7], 0
          %s259 = smul.addr %s256, 16
          %s260 = smul.addr %s259, 4
          %s261 = scalar_lea.hbm %s3, %s260
          %s262 = sshll.u32 %s261, 4
          %s263 = int_to_ptr.hbm [resolvable:$true] %s262
          %s264 = sshll.u32 [#allocation8], 4
          %s265 = int_to_ptr.vmem [resolvable:$true] %s264
          %270 = dma.hbm_to_vmem [thread:$0]  %s263, 2048, %s265, [#allocation7], 64, 64, 4
        $region24: #{tpu_custom_call.1} parent=11 // pred_fallthru
          _
        // Predicated region
        $region25: #{tpu_custom_call.1} parent=11 // pred_check
          %p271 = pneg %p153
        $region26: #{tpu_custom_call.1} parent=11 // pred_check_branch
          %273 = sbr.rel (%p271) target = $region28
        $region27: #{tpu_custom_call.1} parent=11 // pred_region
          %s274 = smul.u32 2, %s31
          %p275 = scmp.lt.s32.totalorder %s274, 1
          %s276 = scalar_select %p275, %s274, 1
          %s277 = scalar_lea.vmem %s4, %s276
          %s278 = smul.u32 2, %s31
        $region28: #{tpu_custom_call.1} parent=11 // pred_fallthru
          _
        // Predicated region
        $region29: #{tpu_custom_call.1} parent=11 // pred_check
          %p279 = pneg %p174
        $region30: #{tpu_custom_call.1} parent=11 // pred_check_branch
          %281 = sbr.rel (%p279) target = $region32
        $region31: #{tpu_custom_call.1} parent=11 // pred_region
          %283 = vsyncadd [#allocation10], 0
          %s284 = sshll.u32 %s5, 4
          %s285 = int_to_ptr.hbm [resolvable:$true] %s284
          %s286 = sshll.u32 [#allocation9], 4
          %s287 = int_to_ptr.vmem [resolvable:$true] %s286
          %292 = dma.hbm_to_vmem [thread:$0]  %s285, 1024, %s287, [#allocation10], 64, 64, 4
        $region32: #{tpu_custom_call.1} parent=11 // pred_fallthru
          _
        // Predicated region
        $region33: #{tpu_custom_call.1} parent=11 // pred_check
          %p293 = pneg %p195
        $region34: #{tpu_custom_call.1} parent=11 // pred_check_branch
          %295 = sbr.rel (%p293) target = $region36
        $region35: #{tpu_custom_call.1} parent=11 // pred_region
          _
        $region36: #{tpu_custom_call.1} parent=11 // pred_fallthru
          _
      $region12: #{tpu_custom_call.1} parent=5 // pred_fallthru
        _
      %p296 = scmp.lt.s32.totalorder %s21, 2
      // Predicated region
      $region37: #{tpu_custom_call.1} parent=5 // pred_check
        %p297 = pneg %p296
      $region38: #{tpu_custom_call.1} parent=5 // pred_check_branch
        %299 = sbr.rel (%p297) target = $region40
      $region39: #{tpu_custom_call.1} parent=5 // pred_region
        // Predicated region
        $region41: #{tpu_custom_call.1} parent=39 // pred_check
          %p300 = pneg %p53
        $region42: #{tpu_custom_call.1} parent=39 // pred_check_branch
          %302 = sbr.rel (%p300) target = $region44
        $region43: #{tpu_custom_call.1} parent=39 // pred_region
          %s303 = sand.u32 %s43, 1
          %s304 = scalar_lea.sflag [#allocation4], %s303
          %s305 = sand.u32 %s43, 1
          %s306 = smul.addr %s305, 320
          %s307 = scalar_lea.vmem [#allocation3], %s306
          %s308 = smul.u32 40, %s28
          %310 = vsyncadd %s304, 0
          %s311 = smul.addr %s308, 8
          %s312 = scalar_lea.hbm %s0, %s311
          %s313 = sshll.u32 %s312, 4
          %s314 = int_to_ptr.hbm [resolvable:$true] %s313
          %s315 = sshll.u32 %s307, 4
          %s316 = int_to_ptr.vmem [resolvable:$true] %s315
          %321 = dma.hbm_to_vmem [thread:$0]  %s314, 5120, %s316, %s304, 128, 128, 8
        $region44: #{tpu_custom_call.1} parent=39 // pred_fallthru
          _
      $region40: #{tpu_custom_call.1} parent=5 // pred_fallthru
        _
      %p322 = scmp.le.s32.totalorder 1, %s21
      %p323 = scmp.lt.s32.totalorder %s21, 3
      %p324 = pnand %p322, %p323
      %p325 = pneg %p324
      // Predicated region
      $region45: #{tpu_custom_call.1} parent=5 // pred_check
        _
      $region46: #{tpu_custom_call.1} parent=5 // pred_check_branch
        %327 = sbr.rel (%p324) target = $region48
      $region47: #{tpu_custom_call.1} parent=5 // pred_region
        %s328 = ssub.s32 %s21, 1
        %s329 = sand.u32 %s46, 1
        %s330 = scalar_lea.sflag [#allocation4], %s329
        %s331 = sand.u32 %s46, 1
        %s332 = smul.addr %s331, 320
        %s333 = scalar_lea.vmem [#allocation3], %s332
        // Predicated region
        $region49: #{tpu_custom_call.1} parent=47 // pred_check
          %p334 = pneg %p59
        $region50: #{tpu_custom_call.1} parent=47 // pred_check_branch
          %336 = sbr.rel (%p334) target = $region52
        $region51: #{tpu_custom_call.1} parent=47 // pred_region
          %338 = dma.done %s330, 5120
        $region52: #{tpu_custom_call.1} parent=47 // pred_fallthru
          _
        // Predicated region
        $region53: #{tpu_custom_call.1} parent=47 // pred_check
          %p339 = pneg %p80
        $region54: #{tpu_custom_call.1} parent=47 // pred_check_branch
          %341 = sbr.rel (%p339) target = $region56
        $region55: #{tpu_custom_call.1} parent=47 // pred_region
          %343 = dma.done [#allocation7], 1024
        $region56: #{tpu_custom_call.1} parent=47 // pred_fallthru
          _
        // Predicated region
        $region57: #{tpu_custom_call.1} parent=47 // pred_check
          %p344 = pneg %p127
        $region58: #{tpu_custom_call.1} parent=47 // pred_check_branch
          %346 = sbr.rel (%p344) target = $region60
        $region59: #{tpu_custom_call.1} parent=47 // pred_region
          %348 = dma.done [#allocation7], 2048
        $region60: #{tpu_custom_call.1} parent=47 // pred_fallthru
          _
        // Predicated region
        $region61: #{tpu_custom_call.1} parent=47 // pred_check
          %p349 = pneg %p174
        $region62: #{tpu_custom_call.1} parent=47 // pred_check_branch
          %351 = sbr.rel (%p349) target = $region64
        $region63: #{tpu_custom_call.1} parent=47 // pred_region
          %353 = dma.done [#allocation10], 1024
        $region64: #{tpu_custom_call.1} parent=47 // pred_fallthru
          _
        %s354 = sand.u32 %s46, 1
        %s355 = scalar_lea.sflag [#allocation4], %s354
        %s356 = sand.u32 %s46, 1
        %s357 = smul.addr %s356, 320
        %s358 = scalar_lea.vmem [#allocation3], %s357
        %p359 = pneg %p59
        %p360 = pneg %p56
        %p361 = pneg %p80
        %p362 = pneg %p77
        %p363 = pneg %p101
        %p364 = pneg %p98
        %p365 = pneg %p127
        %p366 = pneg %p124
        %s367 = smul.u32 2, %s31
        %p368 = scmp.lt.s32.totalorder %s367, 1
        %s369 = scalar_select %p368, %s367, 1
        %s370 = scalar_lea.vmem %s4, %s369
        %p371 = pneg %p153
        %p372 = pneg %p150
        %p373 = pneg %p174
        %p374 = pneg %p171
        %p375 = pneg %p195
        %p376 = pneg %p192
        %p377 = pneg %p221
        %p378 = pneg %p218
        %s379 = sand.u32 %s208, 1
        %s380 = scalar_lea.sflag [#allocation5], %s379
        %s381 = sand.u32 %s208, 1
        %s382 = smul.addr %s381, 320
        %s383 = scalar_lea.vmem [#allocation11], %s382
        %s384 = smul.u32 40, %s30
        %s385 = smul.u32 2, %s31
        %s386 = smul.u32 2, %s31
        %p387 = scmp.lt.s32.totalorder %s386, 1
        %s388 = scalar_select %p387, %s386, 1
        %s389 = scalar_lea.vmem %s4, %s388
        %s390 = smul.u32 2, %s31
        %s391 = smul.u32 40, %s30
        %p392 = scmp.eq.s32.totalorder %s31, 0
        // Predicated region
        $region65: #{tpu_custom_call.1} parent=47 // pred_check
          %p393 = pneg %p392
        $region66: #{tpu_custom_call.1} parent=47 // pred_check_branch
          %395 = sbr.rel (%p393) target = $region68
        $region67: #{tpu_custom_call.1} parent=47 // pred_region
          %v396 = vld [vmem:[%s333] sm:$0xff]
          %v397 = vld [vmem:[%s333 + $0x8] sm:$0xff]
          %v398 = vld [vmem:[%s333 + $0x10] sm:$0xff]
          %v399 = vld [vmem:[%s333 + $0x18] sm:$0xff]
          %v400 = vld [vmem:[%s333 + $0x20] sm:$0xff]
          %v401 = vld [vmem:[%s333 + $0x28] sm:$0xff]
          %v402 = vld [vmem:[%s333 + $0x30] sm:$0xff]
          %v403 = vld [vmem:[%s333 + $0x38] sm:$0xff]
          %v404 = vld [vmem:[%s333 + $0x40] sm:$0xff]
          %v405 = vld [vmem:[%s333 + $0x48] sm:$0xff]
          %v406 = vld [vmem:[%s333 + $0x50] sm:$0xff]
          %v407 = vld [vmem:[%s333 + $0x58] sm:$0xff]
          %v408 = vld [vmem:[%s333 + $0x60] sm:$0xff]
          %v409 = vld [vmem:[%s333 + $0x68] sm:$0xff]
          %v410 = vld [vmem:[%s333 + $0x70] sm:$0xff]
          %v411 = vld [vmem:[%s333 + $0x78] sm:$0xff]
          %v412 = vld [vmem:[%s333 + $0x80] sm:$0xff]
          %v413 = vld [vmem:[%s333 + $0x88] sm:$0xff]
          %v414 = vld [vmem:[%s333 + $0x90] sm:$0xff]
          %v415 = vld [vmem:[%s333 + $0x98] sm:$0xff]
          %v416 = vld [vmem:[%s333 + $0xa0] sm:$0xff]
          %v417 = vld [vmem:[%s333 + $0xa8] sm:$0xff]
          %v418 = vld [vmem:[%s333 + $0xb0] sm:$0xff]
          %v419 = vld [vmem:[%s333 + $0xb8] sm:$0xff]
          %v420 = vld [vmem:[%s333 + $0xc0] sm:$0xff]
          %v421 = vld [vmem:[%s333 + $0xc8] sm:$0xff]
          %v422 = vld [vmem:[%s333 + $0xd0] sm:$0xff]
          %v423 = vld [vmem:[%s333 + $0xd8] sm:$0xff]
          %v424 = vld [vmem:[%s333 + $0xe0] sm:$0xff]
          %v425 = vld [vmem:[%s333 + $0xe8] sm:$0xff]
          %v426 = vld [vmem:[%s333 + $0xf0] sm:$0xff]
          %v427 = vld [vmem:[%s333 + $0xf8] sm:$0xff]
          %v428 = vld [vmem:[%s333 + $0x100] sm:$0xff]
          %v429 = vld [vmem:[%s333 + $0x108] sm:$0xff]
          %v430 = vld [vmem:[%s333 + $0x110] sm:$0xff]
          %v431 = vld [vmem:[%s333 + $0x118] sm:$0xff]
          %v432 = vld [vmem:[%s333 + $0x120] sm:$0xff]
          %v433 = vld [vmem:[%s333 + $0x128] sm:$0xff]
          %v434 = vld [vmem:[%s333 + $0x130] sm:$0xff]
          %v435 = vld [vmem:[%s333 + $0x138] sm:$0xff]
          %v436 = vpack.c.bf16 %v397, %v396
          %v437 = vpack.c.bf16 %v399, %v398
          %v438 = vpack.c.bf16 %v401, %v400
          %v439 = vpack.c.bf16 %v403, %v402
          %v440 = vpack.c.bf16 %v405, %v404
          %v441 = vpack.c.bf16 %v407, %v406
          %v442 = vpack.c.bf16 %v409, %v408
          %v443 = vpack.c.bf16 %v411, %v410
          %v444 = vpack.c.bf16 %v413, %v412
          %v445 = vpack.c.bf16 %v415, %v414
          %v446 = vpack.c.bf16 %v417, %v416
          %v447 = vpack.c.bf16 %v419, %v418
          %v448 = vpack.c.bf16 %v421, %v420
          %v449 = vpack.c.bf16 %v423, %v422
          %v450 = vpack.c.bf16 %v425, %v424
          %v451 = vpack.c.bf16 %v427, %v426
          %v452 = vpack.c.bf16 %v429, %v428
          %v453 = vpack.c.bf16 %v431, %v430
          %v454 = vpack.c.bf16 %v433, %v432
          %v455 = vpack.c.bf16 %v435, %v434
          %v456 = vld [vmem:[#allocation6] sm:$0xf]
          %v457 = vld [vmem:[#allocation6 + $0x4] sm:$0xf]
          %v458 = vld [vmem:[#allocation6 + $0x8] sm:$0xf]
          %v459 = vld [vmem:[#allocation6 + $0xc] sm:$0xf]
          %v460 = vld [vmem:[#allocation6 + $0x10] sm:$0xf]
          %v461 = vld [vmem:[#allocation6 + $0x14] sm:$0xf]
          %v462 = vld [vmem:[#allocation6 + $0x18] sm:$0xf]
          %v463 = vld [vmem:[#allocation6 + $0x1c] sm:$0xf]
          %v464 = vld [vmem:[#allocation6 + $0x20] sm:$0xf]
          %v465 = vld [vmem:[#allocation6 + $0x24] sm:$0xf]
          %v466 = vld [vmem:[#allocation6 + $0x28] sm:$0xf]
          %v467 = vld [vmem:[#allocation6 + $0x2c] sm:$0xf]
          %v468 = vld [vmem:[#allocation6 + $0x30] sm:$0xf]
          %v469 = vld [vmem:[#allocation6 + $0x34] sm:$0xf]
          %v470 = vld [vmem:[#allocation6 + $0x38] sm:$0xf]
          %v471 = vld [vmem:[#allocation6 + $0x3c] sm:$0xf]
          %v472 = vld [vmem:[%s2] sm:$0x1]
          %v473 = vunpack.c.l.bf16 %v472
          %v474 = vperm.slane %v473, 0
          %v491 = vunpack.c.l.b16 %v456
          %v492 = vunpack.c.l.b16 %v457
          %v493 = vunpack.c.l.b16 %v458
          %v494 = vunpack.c.l.b16 %v459
          %v495 = vunpack.c.l.b16 %v460
          %v496 = vunpack.c.l.b16 %v461
          %v497 = vunpack.c.l.b16 %v462
          %v498 = vunpack.c.l.b16 %v463
          %v499 = vunpack.c.l.b16 %v464
          %v500 = vunpack.c.l.b16 %v465
          %v501 = vunpack.c.l.b16 %v466
          %v502 = vunpack.c.l.b16 %v467
          %v503 = vunpack.c.l.b16 %v468
          %v504 = vunpack.c.l.b16 %v469
          %v505 = vunpack.c.l.b16 %v470
          %v506 = vunpack.c.l.b16 %v471
          %v507 = vpack.c.b16 %v492, %v491
          %v508 = vpack.c.b16 %v494, %v493
          %v509 = vpack.c.b16 %v496, %v495
          %v510 = vpack.c.b16 %v498, %v497
          %v511 = vpack.c.b16 %v500, %v499
          %v512 = vpack.c.b16 %v502, %v501
          %v513 = vpack.c.b16 %v504, %v503
          %v514 = vpack.c.b16 %v506, %v505
          %523 = vmatpush.bf16.msra.mxu0 %v514
          %524 = vmatpush.bf16.msra.mxu0 %v513
          %525 = vmatpush.bf16.msra.mxu0 %v512
          %526 = vmatpush.bf16.msra.mxu0 %v511
          %527 = vmatpush.bf16.msra.mxu0 %v510
          %528 = vmatpush.bf16.msra.mxu0 %v509
          %529 = vmatpush.bf16.msra.mxu0 %v508
          %530 = vmatpush.bf16.msra.mxu0 %v507
          %531 = vmatmul.bf16.gmra.mxu0 %v436
          %v532 = vpop.f32.mrf.mxu0
          %v533 = vadd.f32 %v474, %v532
          %v534 = vpop.f32.mrf.mxu0
          %v535 = vadd.f32 %v474, %v534
          %536 = vmatmul.bf16.gmra.mxu0 %v437
          %v537 = vpop.f32.mrf.mxu0
          %v538 = vadd.f32 %v474, %v537
          %v539 = vpop.f32.mrf.mxu0
          %v540 = vadd.f32 %v474, %v539
          %541 = vmatmul.bf16.gmra.mxu0 %v438
          %v542 = vpop.f32.mrf.mxu0
          %v543 = vadd.f32 %v474, %v542
          %v544 = vpop.f32.mrf.mxu0
          %v545 = vadd.f32 %v474, %v544
          %546 = vmatmul.bf16.gmra.mxu0 %v439
          %v547 = vpop.f32.mrf.mxu0
          %v548 = vadd.f32 %v474, %v547
          %v549 = vpop.f32.mrf.mxu0
          %v550 = vadd.f32 %v474, %v549
          %551 = vmatmul.bf16.gmra.mxu0 %v440
          %v552 = vpop.f32.mrf.mxu0
          %v553 = vadd.f32 %v474, %v552
          %v554 = vpop.f32.mrf.mxu0
          %v555 = vadd.f32 %v474, %v554
          %556 = vmatmul.bf16.gmra.mxu0 %v441
          %v557 = vpop.f32.mrf.mxu0
          %v558 = vadd.f32 %v474, %v557
          %v559 = vpop.f32.mrf.mxu0
          %v560 = vadd.f32 %v474, %v559
          %561 = vmatmul.bf16.gmra.mxu0 %v442
          %v562 = vpop.f32.mrf.mxu0
          %v563 = vadd.f32 %v474, %v562
          %v564 = vpop.f32.mrf.mxu0
          %v565 = vadd.f32 %v474, %v564
          %566 = vmatmul.bf16.gmra.mxu0 %v443
          %v567 = vpop.f32.mrf.mxu0
          %v568 = vadd.f32 %v474, %v567
          %v569 = vpop.f32.mrf.mxu0
          %v570 = vadd.f32 %v474, %v569
          %571 = vmatmul.bf16.gmra.mxu0 %v444
          %v572 = vpop.f32.mrf.mxu0
          %v573 = vadd.f32 %v474, %v572
          %v574 = vpop.f32.mrf.mxu0
          %v575 = vadd.f32 %v474, %v574
          %576 = vmatmul.bf16.gmra.mxu0 %v445
          %v577 = vpop.f32.mrf.mxu0
          %v578 = vadd.f32 %v474, %v577
          %v579 = vpop.f32.mrf.mxu0
          %v580 = vadd.f32 %v474, %v579
          %581 = vmatmul.bf16.gmra.mxu0 %v446
          %v582 = vpop.f32.mrf.mxu0
          %v583 = vadd.f32 %v474, %v582
          %v584 = vpop.f32.mrf.mxu0
          %v585 = vadd.f32 %v474, %v584
          %586 = vmatmul.bf16.gmra.mxu0 %v447
          %v587 = vpop.f32.mrf.mxu0
          %v588 = vadd.f32 %v474, %v587
          %v589 = vpop.f32.mrf.mxu0
          %v590 = vadd.f32 %v474, %v589
          %591 = vmatmul.bf16.gmra.mxu0 %v448
          %v592 = vpop.f32.mrf.mxu0
          %v593 = vadd.f32 %v474, %v592
          %v594 = vpop.f32.mrf.mxu0
          %v595 = vadd.f32 %v474, %v594
          %596 = vmatmul.bf16.gmra.mxu0 %v449
          %v597 = vpop.f32.mrf.mxu0
          %v598 = vadd.f32 %v474, %v597
          %v599 = vpop.f32.mrf.mxu0
          %v600 = vadd.f32 %v474, %v599
          %601 = vmatmul.bf16.gmra.mxu0 %v450
          %v602 = vpop.f32.mrf.mxu0
          %v603 = vadd.f32 %v474, %v602
          %v604 = vpop.f32.mrf.mxu0
          %v605 = vadd.f32 %v474, %v604
          %606 = vmatmul.bf16.gmra.mxu0 %v451
          %v607 = vpop.f32.mrf.mxu0
          %v608 = vadd.f32 %v474, %v607
          %v609 = vpop.f32.mrf.mxu0
          %v610 = vadd.f32 %v474, %v609
          %611 = vmatmul.bf16.gmra.mxu0 %v452
          %v612 = vpop.f32.mrf.mxu0
          %v613 = vadd.f32 %v474, %v612
          %v614 = vpop.f32.mrf.mxu0
          %v615 = vadd.f32 %v474, %v614
          %616 = vmatmul.bf16.gmra.mxu0 %v453
          %v617 = vpop.f32.mrf.mxu0
          %v618 = vadd.f32 %v474, %v617
          %v619 = vpop.f32.mrf.mxu0
          %v620 = vadd.f32 %v474, %v619
          %621 = vmatmul.bf16.gmra.mxu0 %v454
          %v622 = vpop.f32.mrf.mxu0
          %v623 = vadd.f32 %v474, %v622
          %v624 = vpop.f32.mrf.mxu0
          %v625 = vadd.f32 %v474, %v624
          %626 = vmatmul.bf16.gmra.mxu0 %v455
          %v627 = vpop.f32.mrf.mxu0
          %v628 = vadd.f32 %v474, %v627
          %v629 = vpop.f32.mrf.mxu0
          %v630 = vadd.f32 %v474, %v629
          %631 = vdwg.mxu0
          %v632 = vmax.f32 %v533, 0.0
          %v633 = vmax.f32 %v535, 0.0
          %v634 = vmax.f32 %v538, 0.0
          %v635 = vmax.f32 %v540, 0.0
          %v636 = vmax.f32 %v543, 0.0
          %v637 = vmax.f32 %v545, 0.0
          %v638 = vmax.f32 %v548, 0.0
          %v639 = vmax.f32 %v550, 0.0
          %v640 = vmax.f32 %v553, 0.0
          %v641 = vmax.f32 %v555, 0.0
          %v642 = vmax.f32 %v558, 0.0
          %v643 = vmax.f32 %v560, 0.0
          %v644 = vmax.f32 %v563, 0.0
          %v645 = vmax.f32 %v565, 0.0
          %v646 = vmax.f32 %v568, 0.0
          %v647 = vmax.f32 %v570, 0.0
          %v648 = vmax.f32 %v573, 0.0
          %v649 = vmax.f32 %v575, 0.0
          %v650 = vmax.f32 %v578, 0.0
          %v651 = vmax.f32 %v580, 0.0
          %v652 = vmax.f32 %v583, 0.0
          %v653 = vmax.f32 %v585, 0.0
          %v654 = vmax.f32 %v588, 0.0
          %v655 = vmax.f32 %v590, 0.0
          %v656 = vmax.f32 %v593, 0.0
          %v657 = vmax.f32 %v595, 0.0
          %v658 = vmax.f32 %v598, 0.0
          %v659 = vmax.f32 %v600, 0.0
          %v660 = vmax.f32 %v603, 0.0
          %v661 = vmax.f32 %v605, 0.0
          %v662 = vmax.f32 %v608, 0.0
          %v663 = vmax.f32 %v610, 0.0
          %v664 = vmax.f32 %v613, 0.0
          %v665 = vmax.f32 %v615, 0.0
          %v666 = vmax.f32 %v618, 0.0
          %v667 = vmax.f32 %v620, 0.0
          %v668 = vmax.f32 %v623, 0.0
          %v669 = vmax.f32 %v625, 0.0
          %v670 = vmax.f32 %v628, 0.0
          %v671 = vmax.f32 %v630, 0.0
          %v672 = vadd.f32 %v632, %v396
          %v673 = vadd.f32 %v633, %v397
          %v674 = vadd.f32 %v634, %v398
          %v675 = vadd.f32 %v635, %v399
          %v676 = vadd.f32 %v636, %v400
          %v677 = vadd.f32 %v637, %v401
          %v678 = vadd.f32 %v638, %v402
          %v679 = vadd.f32 %v639, %v403
          %v680 = vadd.f32 %v640, %v404
          %v681 = vadd.f32 %v641, %v405
          %v682 = vadd.f32 %v642, %v406
          %v683 = vadd.f32 %v643, %v407
          %v684 = vadd.f32 %v644, %v408
          %v685 = vadd.f32 %v645, %v409
          %v686 = vadd.f32 %v646, %v410
          %v687 = vadd.f32 %v647, %v411
          %v688 = vadd.f32 %v648, %v412
          %v689 = vadd.f32 %v649, %v413
          %v690 = vadd.f32 %v650, %v414
          %v691 = vadd.f32 %v651, %v415
          %v692 = vadd.f32 %v652, %v416
          %v693 = vadd.f32 %v653, %v417
          %v694 = vadd.f32 %v654, %v418
          %v695 = vadd.f32 %v655, %v419
          %v696 = vadd.f32 %v656, %v420
          %v697 = vadd.f32 %v657, %v421
          %v698 = vadd.f32 %v658, %v422
          %v699 = vadd.f32 %v659, %v423
          %v700 = vadd.f32 %v660, %v424
          %v701 = vadd.f32 %v661, %v425
          %v702 = vadd.f32 %v662, %v426
          %v703 = vadd.f32 %v663, %v427
          %v704 = vadd.f32 %v664, %v428
          %v705 = vadd.f32 %v665, %v429
          %v706 = vadd.f32 %v666, %v430
          %v707 = vadd.f32 %v667, %v431
          %v708 = vadd.f32 %v668, %v432
          %v709 = vadd.f32 %v669, %v433
          %v710 = vadd.f32 %v670, %v434
          %v711 = vadd.f32 %v671, %v435
          %712 = vst [vmem:[#allocation2] sm:$0xff] %v672
          %713 = vst [vmem:[#allocation2 + $0x8] sm:$0xff] %v673
          %714 = vst [vmem:[#allocation2 + $0x10] sm:$0xff] %v674
          %715 = vst [vmem:[#allocation2 + $0x18] sm:$0xff] %v675
          %716 = vst [vmem:[#allocation2 + $0x20] sm:$0xff] %v676
          %717 = vst [vmem:[#allocation2 + $0x28] sm:$0xff] %v677
          %718 = vst [vmem:[#allocation2 + $0x30] sm:$0xff] %v678
          %719 = vst [vmem:[#allocation2 + $0x38] sm:$0xff] %v679
          %720 = vst [vmem:[#allocation2 + $0x40] sm:$0xff] %v680
          %721 = vst [vmem:[#allocation2 + $0x48] sm:$0xff] %v681
          %722 = vst [vmem:[#allocation2 + $0x50] sm:$0xff] %v682
          %723 = vst [vmem:[#allocation2 + $0x58] sm:$0xff] %v683
          %724 = vst [vmem:[#allocation2 + $0x60] sm:$0xff] %v684
          %725 = vst [vmem:[#allocation2 + $0x68] sm:$0xff] %v685
          %726 = vst [vmem:[#allocation2 + $0x70] sm:$0xff] %v686
          %727 = vst [vmem:[#allocation2 + $0x78] sm:$0xff] %v687
          %728 = vst [vmem:[#allocation2 + $0x80] sm:$0xff] %v688
          %729 = vst [vmem:[#allocation2 + $0x88] sm:$0xff] %v689
          %730 = vst [vmem:[#allocation2 + $0x90] sm:$0xff] %v690
          %731 = vst [vmem:[#allocation2 + $0x98] sm:$0xff] %v691
          %732 = vst [vmem:[#allocation2 + $0xa0] sm:$0xff] %v692
          %733 = vst [vmem:[#allocation2 + $0xa8] sm:$0xff] %v693
          %734 = vst [vmem:[#allocation2 + $0xb0] sm:$0xff] %v694
          %735 = vst [vmem:[#allocation2 + $0xb8] sm:$0xff] %v695
          %736 = vst [vmem:[#allocation2 + $0xc0] sm:$0xff] %v696
          %737 = vst [vmem:[#allocation2 + $0xc8] sm:$0xff] %v697
          %738 = vst [vmem:[#allocation2 + $0xd0] sm:$0xff] %v698
          %739 = vst [vmem:[#allocation2 + $0xd8] sm:$0xff] %v699
          %740 = vst [vmem:[#allocation2 + $0xe0] sm:$0xff] %v700
          %741 = vst [vmem:[#allocation2 + $0xe8] sm:$0xff] %v701
          %742 = vst [vmem:[#allocation2 + $0xf0] sm:$0xff] %v702
          %743 = vst [vmem:[#allocation2 + $0xf8] sm:$0xff] %v703
          %744 = vst [vmem:[#allocation2 + $0x100] sm:$0xff] %v704
          %745 = vst [vmem:[#allocation2 + $0x108] sm:$0xff] %v705
          %746 = vst [vmem:[#allocation2 + $0x110] sm:$0xff] %v706
          %747 = vst [vmem:[#allocation2 + $0x118] sm:$0xff] %v707
          %748 = vst [vmem:[#allocation2 + $0x120] sm:$0xff] %v708
          %749 = vst [vmem:[#allocation2 + $0x128] sm:$0xff] %v709
          %750 = vst [vmem:[#allocation2 + $0x130] sm:$0xff] %v710
          %751 = vst [vmem:[#allocation2 + $0x138] sm:$0xff] %v711
        $region68: #{tpu_custom_call.1} parent=47 // pred_fallthru
          _
        %v752 = vld [vmem:[#allocation2] sm:$0xff]
        %v753 = vld [vmem:[#allocation2 + $0x8] sm:$0xff]
        %v754 = vld [vmem:[#allocation2 + $0x10] sm:$0xff]
        %v755 = vld [vmem:[#allocation2 + $0x18] sm:$0xff]
        %v756 = vld [vmem:[#allocation2 + $0x20] sm:$0xff]
        %v757 = vld [vmem:[#allocation2 + $0x28] sm:$0xff]
        %v758 = vld [vmem:[#allocation2 + $0x30] sm:$0xff]
        %v759 = vld [vmem:[#allocation2 + $0x38] sm:$0xff]
        %v760 = vld [vmem:[#allocation2 + $0x40] sm:$0xff]
        %v761 = vld [vmem:[#allocation2 + $0x48] sm:$0xff]
        %v762 = vld [vmem:[#allocation2 + $0x50] sm:$0xff]
        %v763 = vld [vmem:[#allocation2 + $0x58] sm:$0xff]
        %v764 = vld [vmem:[#allocation2 + $0x60] sm:$0xff]
        %v765 = vld [vmem:[#allocation2 + $0x68] sm:$0xff]
        %v766 = vld [vmem:[#allocation2 + $0x70] sm:$0xff]
        %v767 = vld [vmem:[#allocation2 + $0x78] sm:$0xff]
        %v768 = vld [vmem:[#allocation2 + $0x80] sm:$0xff]
        %v769 = vld [vmem:[#allocation2 + $0x88] sm:$0xff]
        %v770 = vld [vmem:[#allocation2 + $0x90] sm:$0xff]
        %v771 = vld [vmem:[#allocation2 + $0x98] sm:$0xff]
        %v772 = vld [vmem:[#allocation2 + $0xa0] sm:$0xff]
        %v773 = vld [vmem:[#allocation2 + $0xa8] sm:$0xff]
        %v774 = vld [vmem:[#allocation2 + $0xb0] sm:$0xff]
        %v775 = vld [vmem:[#allocation2 + $0xb8] sm:$0xff]
        %v776 = vld [vmem:[#allocation2 + $0xc0] sm:$0xff]
        %v777 = vld [vmem:[#allocation2 + $0xc8] sm:$0xff]
        %v778 = vld [vmem:[#allocation2 + $0xd0] sm:$0xff]
        %v779 = vld [vmem:[#allocation2 + $0xd8] sm:$0xff]
        %v780 = vld [vmem:[#allocation2 + $0xe0] sm:$0xff]
        %v781 = vld [vmem:[#allocation2 + $0xe8] sm:$0xff]
        %v782 = vld [vmem:[#allocation2 + $0xf0] sm:$0xff]
        %v783 = vld [vmem:[#allocation2 + $0xf8] sm:$0xff]
        %v784 = vld [vmem:[#allocation2 + $0x100] sm:$0xff]
        %v785 = vld [vmem:[#allocation2 + $0x108] sm:$0xff]
        %v786 = vld [vmem:[#allocation2 + $0x110] sm:$0xff]
        %v787 = vld [vmem:[#allocation2 + $0x118] sm:$0xff]
        %v788 = vld [vmem:[#allocation2 + $0x120] sm:$0xff]
        %v789 = vld [vmem:[#allocation2 + $0x128] sm:$0xff]
        %v790 = vld [vmem:[#allocation2 + $0x130] sm:$0xff]
        %v791 = vld [vmem:[#allocation2 + $0x138] sm:$0xff]
        %v792 = vld [vmem:[#allocation8] sm:$0xf]
        %v793 = vld [vmem:[#allocation8 + $0x4] sm:$0xf]
        %v794 = vld [vmem:[#allocation8 + $0x8] sm:$0xf]
        %v795 = vld [vmem:[#allocation8 + $0xc] sm:$0xf]
        %v796 = vld [vmem:[#allocation8 + $0x10] sm:$0xf]
        %v797 = vld [vmem:[#allocation8 + $0x14] sm:$0xf]
        %v798 = vld [vmem:[#allocation8 + $0x18] sm:$0xf]
        %v799 = vld [vmem:[#allocation8 + $0x1c] sm:$0xf]
        %v800 = vld [vmem:[#allocation8 + $0x20] sm:$0xf]
        %v801 = vld [vmem:[#allocation8 + $0x24] sm:$0xf]
        %v802 = vld [vmem:[#allocation8 + $0x28] sm:$0xf]
        %v803 = vld [vmem:[#allocation8 + $0x2c] sm:$0xf]
        %v804 = vld [vmem:[#allocation8 + $0x30] sm:$0xf]
        %v805 = vld [vmem:[#allocation8 + $0x34] sm:$0xf]
        %v806 = vld [vmem:[#allocation8 + $0x38] sm:$0xf]
        %v807 = vld [vmem:[#allocation8 + $0x3c] sm:$0xf]
        %v808 = vld [vmem:[%s389] sm:$0x1]
        %v809 = vmax.f32 %v752, 0.0
        %v810 = vmax.f32 %v753, 0.0
        %v811 = vmax.f32 %v754, 0.0
        %v812 = vmax.f32 %v755, 0.0
        %v813 = vmax.f32 %v756, 0.0
        %v814 = vmax.f32 %v757, 0.0
        %v815 = vmax.f32 %v758, 0.0
        %v816 = vmax.f32 %v759, 0.0
        %v817 = vmax.f32 %v760, 0.0
        %v818 = vmax.f32 %v761, 0.0
        %v819 = vmax.f32 %v762, 0.0
        %v820 = vmax.f32 %v763, 0.0
        %v821 = vmax.f32 %v764, 0.0
        %v822 = vmax.f32 %v765, 0.0
        %v823 = vmax.f32 %v766, 0.0
        %v824 = vmax.f32 %v767, 0.0
        %v825 = vmax.f32 %v768, 0.0
        %v826 = vmax.f32 %v769, 0.0
        %v827 = vmax.f32 %v770, 0.0
        %v828 = vmax.f32 %v771, 0.0
        %v829 = vmax.f32 %v772, 0.0
        %v830 = vmax.f32 %v773, 0.0
        %v831 = vmax.f32 %v774, 0.0
        %v832 = vmax.f32 %v775, 0.0
        %v833 = vmax.f32 %v776, 0.0
        %v834 = vmax.f32 %v777, 0.0
        %v835 = vmax.f32 %v778, 0.0
        %v836 = vmax.f32 %v779, 0.0
        %v837 = vmax.f32 %v780, 0.0
        %v838 = vmax.f32 %v781, 0.0
        %v839 = vmax.f32 %v782, 0.0
        %v840 = vmax.f32 %v783, 0.0
        %v841 = vmax.f32 %v784, 0.0
        %v842 = vmax.f32 %v785, 0.0
        %v843 = vmax.f32 %v786, 0.0
        %v844 = vmax.f32 %v787, 0.0
        %v845 = vmax.f32 %v788, 0.0
        %v846 = vmax.f32 %v789, 0.0
        %v847 = vmax.f32 %v790, 0.0
        %v848 = vmax.f32 %v791, 0.0
        %v849 = vpack.c.bf16 %v810, %v809
        %v850 = vpack.c.bf16 %v812, %v811
        %v851 = vpack.c.bf16 %v814, %v813
        %v852 = vpack.c.bf16 %v816, %v815
        %v853 = vpack.c.bf16 %v818, %v817
        %v854 = vpack.c.bf16 %v820, %v819
        %v855 = vpack.c.bf16 %v822, %v821
        %v856 = vpack.c.bf16 %v824, %v823
        %v857 = vpack.c.bf16 %v826, %v825
        %v858 = vpack.c.bf16 %v828, %v827
        %v859 = vpack.c.bf16 %v830, %v829
        %v860 = vpack.c.bf16 %v832, %v831
        %v861 = vpack.c.bf16 %v834, %v833
        %v862 = vpack.c.bf16 %v836, %v835
        %v863 = vpack.c.bf16 %v838, %v837
        %v864 = vpack.c.bf16 %v840, %v839
        %v865 = vpack.c.bf16 %v842, %v841
        %v866 = vpack.c.bf16 %v844, %v843
        %v867 = vpack.c.bf16 %v846, %v845
        %v868 = vpack.c.bf16 %v848, %v847
        %v869 = vunpack.c.l.bf16 %v808
        %v870 = vperm.slane %v869, 0
        %v887 = vunpack.c.l.b16 %v792
        %v888 = vunpack.c.l.b16 %v793
        %v889 = vunpack.c.l.b16 %v794
        %v890 = vunpack.c.l.b16 %v795
        %v891 = vunpack.c.l.b16 %v796
        %v892 = vunpack.c.l.b16 %v797
        %v893 = vunpack.c.l.b16 %v798
        %v894 = vunpack.c.l.b16 %v799
        %v895 = vunpack.c.l.b16 %v800
        %v896 = vunpack.c.l.b16 %v801
        %v897 = vunpack.c.l.b16 %v802
        %v898 = vunpack.c.l.b16 %v803
        %v899 = vunpack.c.l.b16 %v804
        %v900 = vunpack.c.l.b16 %v805
        %v901 = vunpack.c.l.b16 %v806
        %v902 = vunpack.c.l.b16 %v807
        %v903 = vpack.c.b16 %v888, %v887
        %v904 = vpack.c.b16 %v890, %v889
        %v905 = vpack.c.b16 %v892, %v891
        %v906 = vpack.c.b16 %v894, %v893
        %v907 = vpack.c.b16 %v896, %v895
        %v908 = vpack.c.b16 %v898, %v897
        %v909 = vpack.c.b16 %v900, %v899
        %v910 = vpack.c.b16 %v902, %v901
        %919 = vmatpush.bf16.msra.mxu0 %v910
        %920 = vmatpush.bf16.msra.mxu0 %v909
        %921 = vmatpush.bf16.msra.mxu0 %v908
        %922 = vmatpush.bf16.msra.mxu0 %v907
        %923 = vmatpush.bf16.msra.mxu0 %v906
        %924 = vmatpush.bf16.msra.mxu0 %v905
        %925 = vmatpush.bf16.msra.mxu0 %v904
        %926 = vmatpush.bf16.msra.mxu0 %v903
        %927 = vmatmul.bf16.gmra.mxu0 %v849
        %v928 = vpop.f32.mrf.mxu0
        %v929 = vadd.f32 %v870, %v928
        %v930 = vpop.f32.mrf.mxu0
        %v931 = vadd.f32 %v870, %v930
        %932 = vmatmul.bf16.gmra.mxu0 %v850
        %v933 = vpop.f32.mrf.mxu0
        %v934 = vadd.f32 %v870, %v933
        %v935 = vpop.f32.mrf.mxu0
        %v936 = vadd.f32 %v870, %v935
        %937 = vmatmul.bf16.gmra.mxu0 %v851
        %v938 = vpop.f32.mrf.mxu0
        %v939 = vadd.f32 %v870, %v938
        %v940 = vpop.f32.mrf.mxu0
        %v941 = vadd.f32 %v870, %v940
        %942 = vmatmul.bf16.gmra.mxu0 %v852
        %v943 = vpop.f32.mrf.mxu0
        %v944 = vadd.f32 %v870, %v943
        %v945 = vpop.f32.mrf.mxu0
        %v946 = vadd.f32 %v870, %v945
        %947 = vmatmul.bf16.gmra.mxu0 %v853
        %v948 = vpop.f32.mrf.mxu0
        %v949 = vadd.f32 %v870, %v948
        %v950 = vpop.f32.mrf.mxu0
        %v951 = vadd.f32 %v870, %v950
        %952 = vmatmul.bf16.gmra.mxu0 %v854
        %v953 = vpop.f32.mrf.mxu0
        %v954 = vadd.f32 %v870, %v953
        %v955 = vpop.f32.mrf.mxu0
        %v956 = vadd.f32 %v870, %v955
        %957 = vmatmul.bf16.gmra.mxu0 %v855
        %v958 = vpop.f32.mrf.mxu0
        %v959 = vadd.f32 %v870, %v958
        %v960 = vpop.f32.mrf.mxu0
        %v961 = vadd.f32 %v870, %v960
        %962 = vmatmul.bf16.gmra.mxu0 %v856
        %v963 = vpop.f32.mrf.mxu0
        %v964 = vadd.f32 %v870, %v963
        %v965 = vpop.f32.mrf.mxu0
        %v966 = vadd.f32 %v870, %v965
        %967 = vmatmul.bf16.gmra.mxu0 %v857
        %v968 = vpop.f32.mrf.mxu0
        %v969 = vadd.f32 %v870, %v968
        %v970 = vpop.f32.mrf.mxu0
        %v971 = vadd.f32 %v870, %v970
        %972 = vmatmul.bf16.gmra.mxu0 %v858
        %v973 = vpop.f32.mrf.mxu0
        %v974 = vadd.f32 %v870, %v973
        %v975 = vpop.f32.mrf.mxu0
        %v976 = vadd.f32 %v870, %v975
        %977 = vmatmul.bf16.gmra.mxu0 %v859
        %v978 = vpop.f32.mrf.mxu0
        %v979 = vadd.f32 %v870, %v978
        %v980 = vpop.f32.mrf.mxu0
        %v981 = vadd.f32 %v870, %v980
        %982 = vmatmul.bf16.gmra.mxu0 %v860
        %v983 = vpop.f32.mrf.mxu0
        %v984 = vadd.f32 %v870, %v983
        %v985 = vpop.f32.mrf.mxu0
        %v986 = vadd.f32 %v870, %v985
        %987 = vmatmul.bf16.gmra.mxu0 %v861
        %v988 = vpop.f32.mrf.mxu0
        %v989 = vadd.f32 %v870, %v988
        %v990 = vpop.f32.mrf.mxu0
        %v991 = vadd.f32 %v870, %v990
        %992 = vmatmul.bf16.gmra.mxu0 %v862
        %v993 = vpop.f32.mrf.mxu0
        %v994 = vadd.f32 %v870, %v993
        %v995 = vpop.f32.mrf.mxu0
        %v996 = vadd.f32 %v870, %v995
        %997 = vmatmul.bf16.gmra.mxu0 %v863
        %v998 = vpop.f32.mrf.mxu0
        %v999 = vadd.f32 %v870, %v998
        %v1000 = vpop.f32.mrf.mxu0
        %v1001 = vadd.f32 %v870, %v1000
        %1002 = vmatmul.bf16.gmra.mxu0 %v864
        %v1003 = vpop.f32.mrf.mxu0
        %v1004 = vadd.f32 %v870, %v1003
        %v1005 = vpop.f32.mrf.mxu0
        %v1006 = vadd.f32 %v870, %v1005
        %1007 = vmatmul.bf16.gmra.mxu0 %v865
        %v1008 = vpop.f32.mrf.mxu0
        %v1009 = vadd.f32 %v870, %v1008
        %v1010 = vpop.f32.mrf.mxu0
        %v1011 = vadd.f32 %v870, %v1010
        %1012 = vmatmul.bf16.gmra.mxu0 %v866
        %v1013 = vpop.f32.mrf.mxu0
        %v1014 = vadd.f32 %v870, %v1013
        %v1015 = vpop.f32.mrf.mxu0
        %v1016 = vadd.f32 %v870, %v1015
        %1017 = vmatmul.bf16.gmra.mxu0 %v867
        %v1018 = vpop.f32.mrf.mxu0
        %v1019 = vadd.f32 %v870, %v1018
        %v1020 = vpop.f32.mrf.mxu0
        %v1021 = vadd.f32 %v870, %v1020
        %1022 = vmatmul.bf16.gmra.mxu0 %v868
        %v1023 = vpop.f32.mrf.mxu0
        %v1024 = vadd.f32 %v870, %v1023
        %v1025 = vpop.f32.mrf.mxu0
        %v1026 = vadd.f32 %v870, %v1025
        %1027 = vdwg.mxu0
        %v1028 = vadd.f32 %v752, %v929
        %v1029 = vadd.f32 %v753, %v931
        %v1030 = vadd.f32 %v754, %v934
        %v1031 = vadd.f32 %v755, %v936
        %v1032 = vadd.f32 %v756, %v939
        %v1033 = vadd.f32 %v757, %v941
        %v1034 = vadd.f32 %v758, %v944
        %v1035 = vadd.f32 %v759, %v946
        %v1036 = vadd.f32 %v760, %v949
        %v1037 = vadd.f32 %v761, %v951
        %v1038 = vadd.f32 %v762, %v954
        %v1039 = vadd.f32 %v763, %v956
        %v1040 = vadd.f32 %v764, %v959
        %v1041 = vadd.f32 %v765, %v961
        %v1042 = vadd.f32 %v766, %v964
        %v1043 = vadd.f32 %v767, %v966
        %v1044 = vadd.f32 %v768, %v969
        %v1045 = vadd.f32 %v769, %v971
        %v1046 = vadd.f32 %v770, %v974
        %v1047 = vadd.f32 %v771, %v976
        %v1048 = vadd.f32 %v772, %v979
        %v1049 = vadd.f32 %v773, %v981
        %v1050 = vadd.f32 %v774, %v984
        %v1051 = vadd.f32 %v775, %v986
        %v1052 = vadd.f32 %v776, %v989
        %v1053 = vadd.f32 %v777, %v991
        %v1054 = vadd.f32 %v778, %v994
        %v1055 = vadd.f32 %v779, %v996
        %v1056 = vadd.f32 %v780, %v999
        %v1057 = vadd.f32 %v781, %v1001
        %v1058 = vadd.f32 %v782, %v1004
        %v1059 = vadd.f32 %v783, %v1006
        %v1060 = vadd.f32 %v784, %v1009
        %v1061 = vadd.f32 %v785, %v1011
        %v1062 = vadd.f32 %v786, %v1014
        %v1063 = vadd.f32 %v787, %v1016
        %v1064 = vadd.f32 %v788, %v1019
        %v1065 = vadd.f32 %v789, %v1021
        %v1066 = vadd.f32 %v790, %v1024
        %v1067 = vadd.f32 %v791, %v1026
        %s1068 = scalar_lea.vmem [#allocation8], 64
        %v1069 = vld [vmem:[%s1068] sm:$0xf]
        %v1070 = vld [vmem:[%s1068 + $0x4] sm:$0xf]
        %v1071 = vld [vmem:[%s1068 + $0x8] sm:$0xf]
        %v1072 = vld [vmem:[%s1068 + $0xc] sm:$0xf]
        %v1073 = vld [vmem:[%s1068 + $0x10] sm:$0xf]
        %v1074 = vld [vmem:[%s1068 + $0x14] sm:$0xf]
        %v1075 = vld [vmem:[%s1068 + $0x18] sm:$0xf]
        %v1076 = vld [vmem:[%s1068 + $0x1c] sm:$0xf]
        %v1077 = vld [vmem:[%s1068 + $0x20] sm:$0xf]
        %v1078 = vld [vmem:[%s1068 + $0x24] sm:$0xf]
        %v1079 = vld [vmem:[%s1068 + $0x28] sm:$0xf]
        %v1080 = vld [vmem:[%s1068 + $0x2c] sm:$0xf]
        %v1081 = vld [vmem:[%s1068 + $0x30] sm:$0xf]
        %v1082 = vld [vmem:[%s1068 + $0x34] sm:$0xf]
        %v1083 = vld [vmem:[%s1068 + $0x38] sm:$0xf]
        %v1084 = vld [vmem:[%s1068 + $0x3c] sm:$0xf]
        %s1085 = scalar_lea.vmem %s389, 1
        %v1086 = vld [vmem:[%s1085] sm:$0x1]
        %v1087 = vmax.f32 %v1028, 0.0
        %v1088 = vmax.f32 %v1029, 0.0
        %v1089 = vmax.f32 %v1030, 0.0
        %v1090 = vmax.f32 %v1031, 0.0
        %v1091 = vmax.f32 %v1032, 0.0
        %v1092 = vmax.f32 %v1033, 0.0
        %v1093 = vmax.f32 %v1034, 0.0
        %v1094 = vmax.f32 %v1035, 0.0
        %v1095 = vmax.f32 %v1036, 0.0
        %v1096 = vmax.f32 %v1037, 0.0
        %v1097 = vmax.f32 %v1038, 0.0
        %v1098 = vmax.f32 %v1039, 0.0
        %v1099 = vmax.f32 %v1040, 0.0
        %v1100 = vmax.f32 %v1041, 0.0
        %v1101 = vmax.f32 %v1042, 0.0
        %v1102 = vmax.f32 %v1043, 0.0
        %v1103 = vmax.f32 %v1044, 0.0
        %v1104 = vmax.f32 %v1045, 0.0
        %v1105 = vmax.f32 %v1046, 0.0
        %v1106 = vmax.f32 %v1047, 0.0
        %v1107 = vmax.f32 %v1048, 0.0
        %v1108 = vmax.f32 %v1049, 0.0
        %v1109 = vmax.f32 %v1050, 0.0
        %v1110 = vmax.f32 %v1051, 0.0
        %v1111 = vmax.f32 %v1052, 0.0
        %v1112 = vmax.f32 %v1053, 0.0
        %v1113 = vmax.f32 %v1054, 0.0
        %v1114 = vmax.f32 %v1055, 0.0
        %v1115 = vmax.f32 %v1056, 0.0
        %v1116 = vmax.f32 %v1057, 0.0
        %v1117 = vmax.f32 %v1058, 0.0
        %v1118 = vmax.f32 %v1059, 0.0
        %v1119 = vmax.f32 %v1060, 0.0
        %v1120 = vmax.f32 %v1061, 0.0
        %v1121 = vmax.f32 %v1062, 0.0
        %v1122 = vmax.f32 %v1063, 0.0
        %v1123 = vmax.f32 %v1064, 0.0
        %v1124 = vmax.f32 %v1065, 0.0
        %v1125 = vmax.f32 %v1066, 0.0
        %v1126 = vmax.f32 %v1067, 0.0
        %v1127 = vpack.c.bf16 %v1088, %v1087
        %v1128 = vpack.c.bf16 %v1090, %v1089
        %v1129 = vpack.c.bf16 %v1092, %v1091
        %v1130 = vpack.c.bf16 %v1094, %v1093
        %v1131 = vpack.c.bf16 %v1096, %v1095
        %v1132 = vpack.c.bf16 %v1098, %v1097
        %v1133 = vpack.c.bf16 %v1100, %v1099
        %v1134 = vpack.c.bf16 %v1102, %v1101
        %v1135 = vpack.c.bf16 %v1104, %v1103
        %v1136 = vpack.c.bf16 %v1106, %v1105
        %v1137 = vpack.c.bf16 %v1108, %v1107
        %v1138 = vpack.c.bf16 %v1110, %v1109
        %v1139 = vpack.c.bf16 %v1112, %v1111
        %v1140 = vpack.c.bf16 %v1114, %v1113
        %v1141 = vpack.c.bf16 %v1116, %v1115
        %v1142 = vpack.c.bf16 %v1118, %v1117
        %v1143 = vpack.c.bf16 %v1120, %v1119
        %v1144 = vpack.c.bf16 %v1122, %v1121
        %v1145 = vpack.c.bf16 %v1124, %v1123
        %v1146 = vpack.c.bf16 %v1126, %v1125
        %v1147 = vunpack.c.l.bf16 %v1086
        %v1148 = vperm.slane %v1147, 0
        %v1165 = vunpack.c.l.b16 %v1069
        %v1166 = vunpack.c.l.b16 %v1070
        %v1167 = vunpack.c.l.b16 %v1071
        %v1168 = vunpack.c.l.b16 %v1072
        %v1169 = vunpack.c.l.b16 %v1073
        %v1170 = vunpack.c.l.b16 %v1074
        %v1171 = vunpack.c.l.b16 %v1075
        %v1172 = vunpack.c.l.b16 %v1076
        %v1173 = vunpack.c.l.b16 %v1077
        %v1174 = vunpack.c.l.b16 %v1078
        %v1175 = vunpack.c.l.b16 %v1079
        %v1176 = vunpack.c.l.b16 %v1080
        %v1177 = vunpack.c.l.b16 %v1081
        %v1178 = vunpack.c.l.b16 %v1082
        %v1179 = vunpack.c.l.b16 %v1083
        %v1180 = vunpack.c.l.b16 %v1084
        %v1181 = vpack.c.b16 %v1166, %v1165
        %v1182 = vpack.c.b16 %v1168, %v1167
        %v1183 = vpack.c.b16 %v1170, %v1169
        %v1184 = vpack.c.b16 %v1172, %v1171
        %v1185 = vpack.c.b16 %v1174, %v1173
        %v1186 = vpack.c.b16 %v1176, %v1175
        %v1187 = vpack.c.b16 %v1178, %v1177
        %v1188 = vpack.c.b16 %v1180, %v1179
        %1197 = vmatpush.bf16.msra.mxu0 %v1188
        %1198 = vmatpush.bf16.msra.mxu0 %v1187
        %1199 = vmatpush.bf16.msra.mxu0 %v1186
        %1200 = vmatpush.bf16.msra.mxu0 %v1185
        %1201 = vmatpush.bf16.msra.mxu0 %v1184
        %1202 = vmatpush.bf16.msra.mxu0 %v1183
        %1203 = vmatpush.bf16.msra.mxu0 %v1182
        %1204 = vmatpush.bf16.msra.mxu0 %v1181
        %1205 = vmatmul.bf16.gmra.mxu0 %v1127
        %v1206 = vpop.f32.mrf.mxu0
        %v1207 = vadd.f32 %v1148, %v1206
        %v1208 = vpop.f32.mrf.mxu0
        %v1209 = vadd.f32 %v1148, %v1208
        %1210 = vmatmul.bf16.gmra.mxu0 %v1128
        %v1211 = vpop.f32.mrf.mxu0
        %v1212 = vadd.f32 %v1148, %v1211
        %v1213 = vpop.f32.mrf.mxu0
        %v1214 = vadd.f32 %v1148, %v1213
        %1215 = vmatmul.bf16.gmra.mxu0 %v1129
        %v1216 = vpop.f32.mrf.mxu0
        %v1217 = vadd.f32 %v1148, %v1216
        %v1218 = vpop.f32.mrf.mxu0
        %v1219 = vadd.f32 %v1148, %v1218
        %1220 = vmatmul.bf16.gmra.mxu0 %v1130
        %v1221 = vpop.f32.mrf.mxu0
        %v1222 = vadd.f32 %v1148, %v1221
        %v1223 = vpop.f32.mrf.mxu0
        %v1224 = vadd.f32 %v1148, %v1223
        %1225 = vmatmul.bf16.gmra.mxu0 %v1131
        %v1226 = vpop.f32.mrf.mxu0
        %v1227 = vadd.f32 %v1148, %v1226
        %v1228 = vpop.f32.mrf.mxu0
        %v1229 = vadd.f32 %v1148, %v1228
        %1230 = vmatmul.bf16.gmra.mxu0 %v1132
        %v1231 = vpop.f32.mrf.mxu0
        %v1232 = vadd.f32 %v1148, %v1231
        %v1233 = vpop.f32.mrf.mxu0
        %v1234 = vadd.f32 %v1148, %v1233
        %1235 = vmatmul.bf16.gmra.mxu0 %v1133
        %v1236 = vpop.f32.mrf.mxu0
        %v1237 = vadd.f32 %v1148, %v1236
        %v1238 = vpop.f32.mrf.mxu0
        %v1239 = vadd.f32 %v1148, %v1238
        %1240 = vmatmul.bf16.gmra.mxu0 %v1134
        %v1241 = vpop.f32.mrf.mxu0
        %v1242 = vadd.f32 %v1148, %v1241
        %v1243 = vpop.f32.mrf.mxu0
        %v1244 = vadd.f32 %v1148, %v1243
        %1245 = vmatmul.bf16.gmra.mxu0 %v1135
        %v1246 = vpop.f32.mrf.mxu0
        %v1247 = vadd.f32 %v1148, %v1246
        %v1248 = vpop.f32.mrf.mxu0
        %v1249 = vadd.f32 %v1148, %v1248
        %1250 = vmatmul.bf16.gmra.mxu0 %v1136
        %v1251 = vpop.f32.mrf.mxu0
        %v1252 = vadd.f32 %v1148, %v1251
        %v1253 = vpop.f32.mrf.mxu0
        %v1254 = vadd.f32 %v1148, %v1253
        %1255 = vmatmul.bf16.gmra.mxu0 %v1137
        %v1256 = vpop.f32.mrf.mxu0
        %v1257 = vadd.f32 %v1148, %v1256
        %v1258 = vpop.f32.mrf.mxu0
        %v1259 = vadd.f32 %v1148, %v1258
        %1260 = vmatmul.bf16.gmra.mxu0 %v1138
        %v1261 = vpop.f32.mrf.mxu0
        %v1262 = vadd.f32 %v1148, %v1261
        %v1263 = vpop.f32.mrf.mxu0
        %v1264 = vadd.f32 %v1148, %v1263
        %1265 = vmatmul.bf16.gmra.mxu0 %v1139
        %v1266 = vpop.f32.mrf.mxu0
        %v1267 = vadd.f32 %v1148, %v1266
        %v1268 = vpop.f32.mrf.mxu0
        %v1269 = vadd.f32 %v1148, %v1268
        %1270 = vmatmul.bf16.gmra.mxu0 %v1140
        %v1271 = vpop.f32.mrf.mxu0
        %v1272 = vadd.f32 %v1148, %v1271
        %v1273 = vpop.f32.mrf.mxu0
        %v1274 = vadd.f32 %v1148, %v1273
        %1275 = vmatmul.bf16.gmra.mxu0 %v1141
        %v1276 = vpop.f32.mrf.mxu0
        %v1277 = vadd.f32 %v1148, %v1276
        %v1278 = vpop.f32.mrf.mxu0
        %v1279 = vadd.f32 %v1148, %v1278
        %1280 = vmatmul.bf16.gmra.mxu0 %v1142
        %v1281 = vpop.f32.mrf.mxu0
        %v1282 = vadd.f32 %v1148, %v1281
        %v1283 = vpop.f32.mrf.mxu0
        %v1284 = vadd.f32 %v1148, %v1283
        %1285 = vmatmul.bf16.gmra.mxu0 %v1143
        %v1286 = vpop.f32.mrf.mxu0
        %v1287 = vadd.f32 %v1148, %v1286
        %v1288 = vpop.f32.mrf.mxu0
        %v1289 = vadd.f32 %v1148, %v1288
        %1290 = vmatmul.bf16.gmra.mxu0 %v1144
        %v1291 = vpop.f32.mrf.mxu0
        %v1292 = vadd.f32 %v1148, %v1291
        %v1293 = vpop.f32.mrf.mxu0
        %v1294 = vadd.f32 %v1148, %v1293
        %1295 = vmatmul.bf16.gmra.mxu0 %v1145
        %v1296 = vpop.f32.mrf.mxu0
        %v1297 = vadd.f32 %v1148, %v1296
        %v1298 = vpop.f32.mrf.mxu0
        %v1299 = vadd.f32 %v1148, %v1298
        %1300 = vmatmul.bf16.gmra.mxu0 %v1146
        %v1301 = vpop.f32.mrf.mxu0
        %v1302 = vadd.f32 %v1148, %v1301
        %v1303 = vpop.f32.mrf.mxu0
        %v1304 = vadd.f32 %v1148, %v1303
        %1305 = vdwg.mxu0
        %v1306 = vadd.f32 %v1028, %v1207
        %v1307 = vadd.f32 %v1029, %v1209
        %v1308 = vadd.f32 %v1030, %v1212
        %v1309 = vadd.f32 %v1031, %v1214
        %v1310 = vadd.f32 %v1032, %v1217
        %v1311 = vadd.f32 %v1033, %v1219
        %v1312 = vadd.f32 %v1034, %v1222
        %v1313 = vadd.f32 %v1035, %v1224
        %v1314 = vadd.f32 %v1036, %v1227
        %v1315 = vadd.f32 %v1037, %v1229
        %v1316 = vadd.f32 %v1038, %v1232
        %v1317 = vadd.f32 %v1039, %v1234
        %v1318 = vadd.f32 %v1040, %v1237
        %v1319 = vadd.f32 %v1041, %v1239
        %v1320 = vadd.f32 %v1042, %v1242
        %v1321 = vadd.f32 %v1043, %v1244
        %v1322 = vadd.f32 %v1044, %v1247
        %v1323 = vadd.f32 %v1045, %v1249
        %v1324 = vadd.f32 %v1046, %v1252
        %v1325 = vadd.f32 %v1047, %v1254
        %v1326 = vadd.f32 %v1048, %v1257
        %v1327 = vadd.f32 %v1049, %v1259
        %v1328 = vadd.f32 %v1050, %v1262
        %v1329 = vadd.f32 %v1051, %v1264
        %v1330 = vadd.f32 %v1052, %v1267
        %v1331 = vadd.f32 %v1053, %v1269
        %v1332 = vadd.f32 %v1054, %v1272
        %v1333 = vadd.f32 %v1055, %v1274
        %v1334 = vadd.f32 %v1056, %v1277
        %v1335 = vadd.f32 %v1057, %v1279
        %v1336 = vadd.f32 %v1058, %v1282
        %v1337 = vadd.f32 %v1059, %v1284
        %v1338 = vadd.f32 %v1060, %v1287
        %v1339 = vadd.f32 %v1061, %v1289
        %v1340 = vadd.f32 %v1062, %v1292
        %v1341 = vadd.f32 %v1063, %v1294
        %v1342 = vadd.f32 %v1064, %v1297
        %v1343 = vadd.f32 %v1065, %v1299
        %v1344 = vadd.f32 %v1066, %v1302
        %v1345 = vadd.f32 %v1067, %v1304
        %1346 = vst [vmem:[#allocation2] sm:$0xff] %v1306
        %1347 = vst [vmem:[#allocation2 + $0x8] sm:$0xff] %v1307
        %1348 = vst [vmem:[#allocation2 + $0x10] sm:$0xff] %v1308
        %1349 = vst [vmem:[#allocation2 + $0x18] sm:$0xff] %v1309
        %1350 = vst [vmem:[#allocation2 + $0x20] sm:$0xff] %v1310
        %1351 = vst [vmem:[#allocation2 + $0x28] sm:$0xff] %v1311
        %1352 = vst [vmem:[#allocation2 + $0x30] sm:$0xff] %v1312
        %1353 = vst [vmem:[#allocation2 + $0x38] sm:$0xff] %v1313
        %1354 = vst [vmem:[#allocation2 + $0x40] sm:$0xff] %v1314
        %1355 = vst [vmem:[#allocation2 + $0x48] sm:$0xff] %v1315
        %1356 = vst [vmem:[#allocation2 + $0x50] sm:$0xff] %v1316
        %1357 = vst [vmem:[#allocation2 + $0x58] sm:$0xff] %v1317
        %1358 = vst [vmem:[#allocation2 + $0x60] sm:$0xff] %v1318
        %1359 = vst [vmem:[#allocation2 + $0x68] sm:$0xff] %v1319
        %1360 = vst [vmem:[#allocation2 + $0x70] sm:$0xff] %v1320
        %1361 = vst [vmem:[#allocation2 + $0x78] sm:$0xff] %v1321
        %1362 = vst [vmem:[#allocation2 + $0x80] sm:$0xff] %v1322
        %1363 = vst [vmem:[#allocation2 + $0x88] sm:$0xff] %v1323
        %1364 = vst [vmem:[#allocation2 + $0x90] sm:$0xff] %v1324
        %1365 = vst [vmem:[#allocation2 + $0x98] sm:$0xff] %v1325
        %1366 = vst [vmem:[#allocation2 + $0xa0] sm:$0xff] %v1326
        %1367 = vst [vmem:[#allocation2 + $0xa8] sm:$0xff] %v1327
        %1368 = vst [vmem:[#allocation2 + $0xb0] sm:$0xff] %v1328
        %1369 = vst [vmem:[#allocation2 + $0xb8] sm:$0xff] %v1329
        %1370 = vst [vmem:[#allocation2 + $0xc0] sm:$0xff] %v1330
        %1371 = vst [vmem:[#allocation2 + $0xc8] sm:$0xff] %v1331
        %1372 = vst [vmem:[#allocation2 + $0xd0] sm:$0xff] %v1332
        %1373 = vst [vmem:[#allocation2 + $0xd8] sm:$0xff] %v1333
        %1374 = vst [vmem:[#allocation2 + $0xe0] sm:$0xff] %v1334
        %1375 = vst [vmem:[#allocation2 + $0xe8] sm:$0xff] %v1335
        %1376 = vst [vmem:[#allocation2 + $0xf0] sm:$0xff] %v1336
        %1377 = vst [vmem:[#allocation2 + $0xf8] sm:$0xff] %v1337
        %1378 = vst [vmem:[#allocation2 + $0x100] sm:$0xff] %v1338
        %1379 = vst [vmem:[#allocation2 + $0x108] sm:$0xff] %v1339
        %1380 = vst [vmem:[#allocation2 + $0x110] sm:$0xff] %v1340
        %1381 = vst [vmem:[#allocation2 + $0x118] sm:$0xff] %v1341
        %1382 = vst [vmem:[#allocation2 + $0x120] sm:$0xff] %v1342
        %1383 = vst [vmem:[#allocation2 + $0x128] sm:$0xff] %v1343
        %1384 = vst [vmem:[#allocation2 + $0x130] sm:$0xff] %v1344
        %1385 = vst [vmem:[#allocation2 + $0x138] sm:$0xff] %v1345
        // Predicated region
        $region69: #{tpu_custom_call.1} parent=47 // pred_check
          %p1386 = pneg %p392
        $region70: #{tpu_custom_call.1} parent=47 // pred_check_branch
          %1388 = sbr.rel (%p1386) target = $region72
        $region71: #{tpu_custom_call.1} parent=47 // pred_region
          %v1389 = vld [vmem:[#allocation2] sm:$0xff]
          %v1390 = vld [vmem:[#allocation2 + $0x8] sm:$0xff]
          %v1391 = vld [vmem:[#allocation2 + $0x10] sm:$0xff]
          %v1392 = vld [vmem:[#allocation2 + $0x18] sm:$0xff]
          %v1393 = vld [vmem:[#allocation2 + $0x20] sm:$0xff]
          %v1394 = vld [vmem:[#allocation2 + $0x28] sm:$0xff]
          %v1395 = vld [vmem:[#allocation2 + $0x30] sm:$0xff]
          %v1396 = vld [vmem:[#allocation2 + $0x38] sm:$0xff]
          %v1397 = vld [vmem:[#allocation2 + $0x40] sm:$0xff]
          %v1398 = vld [vmem:[#allocation2 + $0x48] sm:$0xff]
          %v1399 = vld [vmem:[#allocation2 + $0x50] sm:$0xff]
          %v1400 = vld [vmem:[#allocation2 + $0x58] sm:$0xff]
          %v1401 = vld [vmem:[#allocation2 + $0x60] sm:$0xff]
          %v1402 = vld [vmem:[#allocation2 + $0x68] sm:$0xff]
          %v1403 = vld [vmem:[#allocation2 + $0x70] sm:$0xff]
          %v1404 = vld [vmem:[#allocation2 + $0x78] sm:$0xff]
          %v1405 = vld [vmem:[#allocation2 + $0x80] sm:$0xff]
          %v1406 = vld [vmem:[#allocation2 + $0x88] sm:$0xff]
          %v1407 = vld [vmem:[#allocation2 + $0x90] sm:$0xff]
          %v1408 = vld [vmem:[#allocation2 + $0x98] sm:$0xff]
          %v1409 = vld [vmem:[#allocation2 + $0xa0] sm:$0xff]
          %v1410 = vld [vmem:[#allocation2 + $0xa8] sm:$0xff]
          %v1411 = vld [vmem:[#allocation2 + $0xb0] sm:$0xff]
          %v1412 = vld [vmem:[#allocation2 + $0xb8] sm:$0xff]
          %v1413 = vld [vmem:[#allocation2 + $0xc0] sm:$0xff]
          %v1414 = vld [vmem:[#allocation2 + $0xc8] sm:$0xff]
          %v1415 = vld [vmem:[#allocation2 + $0xd0] sm:$0xff]
          %v1416 = vld [vmem:[#allocation2 + $0xd8] sm:$0xff]
          %v1417 = vld [vmem:[#allocation2 + $0xe0] sm:$0xff]
          %v1418 = vld [vmem:[#allocation2 + $0xe8] sm:$0xff]
          %v1419 = vld [vmem:[#allocation2 + $0xf0] sm:$0xff]
          %v1420 = vld [vmem:[#allocation2 + $0xf8] sm:$0xff]
          %v1421 = vld [vmem:[#allocation2 + $0x100] sm:$0xff]
          %v1422 = vld [vmem:[#allocation2 + $0x108] sm:$0xff]
          %v1423 = vld [vmem:[#allocation2 + $0x110] sm:$0xff]
          %v1424 = vld [vmem:[#allocation2 + $0x118] sm:$0xff]
          %v1425 = vld [vmem:[#allocation2 + $0x120] sm:$0xff]
          %v1426 = vld [vmem:[#allocation2 + $0x128] sm:$0xff]
          %v1427 = vld [vmem:[#allocation2 + $0x130] sm:$0xff]
          %v1428 = vld [vmem:[#allocation2 + $0x138] sm:$0xff]
          %v1429 = vmax.f32 %v1389, 0.0
          %v1430 = vmax.f32 %v1390, 0.0
          %v1431 = vmax.f32 %v1391, 0.0
          %v1432 = vmax.f32 %v1392, 0.0
          %v1433 = vmax.f32 %v1393, 0.0
          %v1434 = vmax.f32 %v1394, 0.0
          %v1435 = vmax.f32 %v1395, 0.0
          %v1436 = vmax.f32 %v1396, 0.0
          %v1437 = vmax.f32 %v1397, 0.0
          %v1438 = vmax.f32 %v1398, 0.0
          %v1439 = vmax.f32 %v1399, 0.0
          %v1440 = vmax.f32 %v1400, 0.0
          %v1441 = vmax.f32 %v1401, 0.0
          %v1442 = vmax.f32 %v1402, 0.0
          %v1443 = vmax.f32 %v1403, 0.0
          %v1444 = vmax.f32 %v1404, 0.0
          %v1445 = vmax.f32 %v1405, 0.0
          %v1446 = vmax.f32 %v1406, 0.0
          %v1447 = vmax.f32 %v1407, 0.0
          %v1448 = vmax.f32 %v1408, 0.0
          %v1449 = vmax.f32 %v1409, 0.0
          %v1450 = vmax.f32 %v1410, 0.0
          %v1451 = vmax.f32 %v1411, 0.0
          %v1452 = vmax.f32 %v1412, 0.0
          %v1453 = vmax.f32 %v1413, 0.0
          %v1454 = vmax.f32 %v1414, 0.0
          %v1455 = vmax.f32 %v1415, 0.0
          %v1456 = vmax.f32 %v1416, 0.0
          %v1457 = vmax.f32 %v1417, 0.0
          %v1458 = vmax.f32 %v1418, 0.0
          %v1459 = vmax.f32 %v1419, 0.0
          %v1460 = vmax.f32 %v1420, 0.0
          %v1461 = vmax.f32 %v1421, 0.0
          %v1462 = vmax.f32 %v1422, 0.0
          %v1463 = vmax.f32 %v1423, 0.0
          %v1464 = vmax.f32 %v1424, 0.0
          %v1465 = vmax.f32 %v1425, 0.0
          %v1466 = vmax.f32 %v1426, 0.0
          %v1467 = vmax.f32 %v1427, 0.0
          %v1468 = vmax.f32 %v1428, 0.0
          %v1469 = vpack.c.bf16 %v1430, %v1429
          %v1470 = vpack.c.bf16 %v1432, %v1431
          %v1471 = vpack.c.bf16 %v1434, %v1433
          %v1472 = vpack.c.bf16 %v1436, %v1435
          %v1473 = vpack.c.bf16 %v1438, %v1437
          %v1474 = vpack.c.bf16 %v1440, %v1439
          %v1475 = vpack.c.bf16 %v1442, %v1441
          %v1476 = vpack.c.bf16 %v1444, %v1443
          %v1477 = vpack.c.bf16 %v1446, %v1445
          %v1478 = vpack.c.bf16 %v1448, %v1447
          %v1479 = vpack.c.bf16 %v1450, %v1449
          %v1480 = vpack.c.bf16 %v1452, %v1451
          %v1481 = vpack.c.bf16 %v1454, %v1453
          %v1482 = vpack.c.bf16 %v1456, %v1455
          %v1483 = vpack.c.bf16 %v1458, %v1457
          %v1484 = vpack.c.bf16 %v1460, %v1459
          %v1485 = vpack.c.bf16 %v1462, %v1461
          %v1486 = vpack.c.bf16 %v1464, %v1463
          %v1487 = vpack.c.bf16 %v1466, %v1465
          %v1488 = vpack.c.bf16 %v1468, %v1467
          %v1489 = vld [vmem:[#allocation9] sm:$0xf]
          %v1490 = vld [vmem:[#allocation9 + $0x4] sm:$0xf]
          %v1491 = vld [vmem:[#allocation9 + $0x8] sm:$0xf]
          %v1492 = vld [vmem:[#allocation9 + $0xc] sm:$0xf]
          %v1493 = vld [vmem:[#allocation9 + $0x10] sm:$0xf]
          %v1494 = vld [vmem:[#allocation9 + $0x14] sm:$0xf]
          %v1495 = vld [vmem:[#allocation9 + $0x18] sm:$0xf]
          %v1496 = vld [vmem:[#allocation9 + $0x1c] sm:$0xf]
          %v1497 = vld [vmem:[#allocation9 + $0x20] sm:$0xf]
          %v1498 = vld [vmem:[#allocation9 + $0x24] sm:$0xf]
          %v1499 = vld [vmem:[#allocation9 + $0x28] sm:$0xf]
          %v1500 = vld [vmem:[#allocation9 + $0x2c] sm:$0xf]
          %v1501 = vld [vmem:[#allocation9 + $0x30] sm:$0xf]
          %v1502 = vld [vmem:[#allocation9 + $0x34] sm:$0xf]
          %v1503 = vld [vmem:[#allocation9 + $0x38] sm:$0xf]
          %v1504 = vld [vmem:[#allocation9 + $0x3c] sm:$0xf]
          %v1505 = vld [vmem:[%s6] sm:$0x1]
          %v1506 = vunpack.c.l.bf16 %v1505
          %v1507 = vperm.slane %v1506, 0
          %v1524 = vunpack.c.l.b16 %v1489
          %v1525 = vunpack.c.l.b16 %v1490
          %v1526 = vunpack.c.l.b16 %v1491
          %v1527 = vunpack.c.l.b16 %v1492
          %v1528 = vunpack.c.l.b16 %v1493
          %v1529 = vunpack.c.l.b16 %v1494
          %v1530 = vunpack.c.l.b16 %v1495
          %v1531 = vunpack.c.l.b16 %v1496
          %v1532 = vunpack.c.l.b16 %v1497
          %v1533 = vunpack.c.l.b16 %v1498
          %v1534 = vunpack.c.l.b16 %v1499
          %v1535 = vunpack.c.l.b16 %v1500
          %v1536 = vunpack.c.l.b16 %v1501
          %v1537 = vunpack.c.l.b16 %v1502
          %v1538 = vunpack.c.l.b16 %v1503
          %v1539 = vunpack.c.l.b16 %v1504
          %v1540 = vpack.c.b16 %v1525, %v1524
          %v1541 = vpack.c.b16 %v1527, %v1526
          %v1542 = vpack.c.b16 %v1529, %v1528
          %v1543 = vpack.c.b16 %v1531, %v1530
          %v1544 = vpack.c.b16 %v1533, %v1532
          %v1545 = vpack.c.b16 %v1535, %v1534
          %v1546 = vpack.c.b16 %v1537, %v1536
          %v1547 = vpack.c.b16 %v1539, %v1538
          %1556 = vmatpush.bf16.msra.mxu0 %v1547
          %1557 = vmatpush.bf16.msra.mxu0 %v1546
          %1558 = vmatpush.bf16.msra.mxu0 %v1545
          %1559 = vmatpush.bf16.msra.mxu0 %v1544
          %1560 = vmatpush.bf16.msra.mxu0 %v1543
          %1561 = vmatpush.bf16.msra.mxu0 %v1542
          %1562 = vmatpush.bf16.msra.mxu0 %v1541
          %1563 = vmatpush.bf16.msra.mxu0 %v1540
          %1564 = vmatmul.bf16.gmra.mxu0 %v1469
          %v1565 = vpop.f32.mrf.mxu0
          %v1566 = vadd.f32 %v1507, %v1565
          %v1567 = vpop.f32.mrf.mxu0
          %v1568 = vadd.f32 %v1507, %v1567
          %1569 = vmatmul.bf16.gmra.mxu0 %v1470
          %v1570 = vpop.f32.mrf.mxu0
          %v1571 = vadd.f32 %v1507, %v1570
          %v1572 = vpop.f32.mrf.mxu0
          %v1573 = vadd.f32 %v1507, %v1572
          %1574 = vmatmul.bf16.gmra.mxu0 %v1471
          %v1575 = vpop.f32.mrf.mxu0
          %v1576 = vadd.f32 %v1507, %v1575
          %v1577 = vpop.f32.mrf.mxu0
          %v1578 = vadd.f32 %v1507, %v1577
          %1579 = vmatmul.bf16.gmra.mxu0 %v1472
          %v1580 = vpop.f32.mrf.mxu0
          %v1581 = vadd.f32 %v1507, %v1580
          %v1582 = vpop.f32.mrf.mxu0
          %v1583 = vadd.f32 %v1507, %v1582
          %1584 = vmatmul.bf16.gmra.mxu0 %v1473
          %v1585 = vpop.f32.mrf.mxu0
          %v1586 = vadd.f32 %v1507, %v1585
          %v1587 = vpop.f32.mrf.mxu0
          %v1588 = vadd.f32 %v1507, %v1587
          %1589 = vmatmul.bf16.gmra.mxu0 %v1474
          %v1590 = vpop.f32.mrf.mxu0
          %v1591 = vadd.f32 %v1507, %v1590
          %v1592 = vpop.f32.mrf.mxu0
          %v1593 = vadd.f32 %v1507, %v1592
          %1594 = vmatmul.bf16.gmra.mxu0 %v1475
          %v1595 = vpop.f32.mrf.mxu0
          %v1596 = vadd.f32 %v1507, %v1595
          %v1597 = vpop.f32.mrf.mxu0
          %v1598 = vadd.f32 %v1507, %v1597
          %1599 = vmatmul.bf16.gmra.mxu0 %v1476
          %v1600 = vpop.f32.mrf.mxu0
          %v1601 = vadd.f32 %v1507, %v1600
          %v1602 = vpop.f32.mrf.mxu0
          %v1603 = vadd.f32 %v1507, %v1602
          %1604 = vmatmul.bf16.gmra.mxu0 %v1477
          %v1605 = vpop.f32.mrf.mxu0
          %v1606 = vadd.f32 %v1507, %v1605
          %v1607 = vpop.f32.mrf.mxu0
          %v1608 = vadd.f32 %v1507, %v1607
          %1609 = vmatmul.bf16.gmra.mxu0 %v1478
          %v1610 = vpop.f32.mrf.mxu0
          %v1611 = vadd.f32 %v1507, %v1610
          %v1612 = vpop.f32.mrf.mxu0
          %v1613 = vadd.f32 %v1507, %v1612
          %1614 = vmatmul.bf16.gmra.mxu0 %v1479
          %v1615 = vpop.f32.mrf.mxu0
          %v1616 = vadd.f32 %v1507, %v1615
          %v1617 = vpop.f32.mrf.mxu0
          %v1618 = vadd.f32 %v1507, %v1617
          %1619 = vmatmul.bf16.gmra.mxu0 %v1480
          %v1620 = vpop.f32.mrf.mxu0
          %v1621 = vadd.f32 %v1507, %v1620
          %v1622 = vpop.f32.mrf.mxu0
          %v1623 = vadd.f32 %v1507, %v1622
          %1624 = vmatmul.bf16.gmra.mxu0 %v1481
          %v1625 = vpop.f32.mrf.mxu0
          %v1626 = vadd.f32 %v1507, %v1625
          %v1627 = vpop.f32.mrf.mxu0
          %v1628 = vadd.f32 %v1507, %v1627
          %1629 = vmatmul.bf16.gmra.mxu0 %v1482
          %v1630 = vpop.f32.mrf.mxu0
          %v1631 = vadd.f32 %v1507, %v1630
          %v1632 = vpop.f32.mrf.mxu0
          %v1633 = vadd.f32 %v1507, %v1632
          %1634 = vmatmul.bf16.gmra.mxu0 %v1483
          %v1635 = vpop.f32.mrf.mxu0
          %v1636 = vadd.f32 %v1507, %v1635
          %v1637 = vpop.f32.mrf.mxu0
          %v1638 = vadd.f32 %v1507, %v1637
          %1639 = vmatmul.bf16.gmra.mxu0 %v1484
          %v1640 = vpop.f32.mrf.mxu0
          %v1641 = vadd.f32 %v1507, %v1640
          %v1642 = vpop.f32.mrf.mxu0
          %v1643 = vadd.f32 %v1507, %v1642
          %1644 = vmatmul.bf16.gmra.mxu0 %v1485
          %v1645 = vpop.f32.mrf.mxu0
          %v1646 = vadd.f32 %v1507, %v1645
          %v1647 = vpop.f32.mrf.mxu0
          %v1648 = vadd.f32 %v1507, %v1647
          %1649 = vmatmul.bf16.gmra.mxu0 %v1486
          %v1650 = vpop.f32.mrf.mxu0
          %v1651 = vadd.f32 %v1507, %v1650
          %v1652 = vpop.f32.mrf.mxu0
          %v1653 = vadd.f32 %v1507, %v1652
          %1654 = vmatmul.bf16.gmra.mxu0 %v1487
          %v1655 = vpop.f32.mrf.mxu0
          %v1656 = vadd.f32 %v1507, %v1655
          %v1657 = vpop.f32.mrf.mxu0
          %v1658 = vadd.f32 %v1507, %v1657
          %1659 = vmatmul.bf16.gmra.mxu0 %v1488
          %v1660 = vpop.f32.mrf.mxu0
          %v1661 = vadd.f32 %v1507, %v1660
          %v1662 = vpop.f32.mrf.mxu0
          %v1663 = vadd.f32 %v1507, %v1662
          %1664 = vdwg.mxu0
          %v1665 = vadd.f32 %v1566, %v1389
          %v1666 = vadd.f32 %v1568, %v1390
          %v1667 = vadd.f32 %v1571, %v1391
          %v1668 = vadd.f32 %v1573, %v1392
          %v1669 = vadd.f32 %v1576, %v1393
          %v1670 = vadd.f32 %v1578, %v1394
          %v1671 = vadd.f32 %v1581, %v1395
          %v1672 = vadd.f32 %v1583, %v1396
          %v1673 = vadd.f32 %v1586, %v1397
          %v1674 = vadd.f32 %v1588, %v1398
          %v1675 = vadd.f32 %v1591, %v1399
          %v1676 = vadd.f32 %v1593, %v1400
          %v1677 = vadd.f32 %v1596, %v1401
          %v1678 = vadd.f32 %v1598, %v1402
          %v1679 = vadd.f32 %v1601, %v1403
          %v1680 = vadd.f32 %v1603, %v1404
          %v1681 = vadd.f32 %v1606, %v1405
          %v1682 = vadd.f32 %v1608, %v1406
          %v1683 = vadd.f32 %v1611, %v1407
          %v1684 = vadd.f32 %v1613, %v1408
          %v1685 = vadd.f32 %v1616, %v1409
          %v1686 = vadd.f32 %v1618, %v1410
          %v1687 = vadd.f32 %v1621, %v1411
          %v1688 = vadd.f32 %v1623, %v1412
          %v1689 = vadd.f32 %v1626, %v1413
          %v1690 = vadd.f32 %v1628, %v1414
          %v1691 = vadd.f32 %v1631, %v1415
          %v1692 = vadd.f32 %v1633, %v1416
          %v1693 = vadd.f32 %v1636, %v1417
          %v1694 = vadd.f32 %v1638, %v1418
          %v1695 = vadd.f32 %v1641, %v1419
          %v1696 = vadd.f32 %v1643, %v1420
          %v1697 = vadd.f32 %v1646, %v1421
          %v1698 = vadd.f32 %v1648, %v1422
          %v1699 = vadd.f32 %v1651, %v1423
          %v1700 = vadd.f32 %v1653, %v1424
          %v1701 = vadd.f32 %v1656, %v1425
          %v1702 = vadd.f32 %v1658, %v1426
          %v1703 = vadd.f32 %v1661, %v1427
          %v1704 = vadd.f32 %v1663, %v1428
          %1705 = vst [vmem:[%s383] sm:$0xff] %v1665
          %1706 = vst [vmem:[%s383 + $0x8] sm:$0xff] %v1666
          %1707 = vst [vmem:[%s383 + $0x10] sm:$0xff] %v1667
          %1708 = vst [vmem:[%s383 + $0x18] sm:$0xff] %v1668
          %1709 = vst [vmem:[%s383 + $0x20] sm:$0xff] %v1669
          %1710 = vst [vmem:[%s383 + $0x28] sm:$0xff] %v1670
          %1711 = vst [vmem:[%s383 + $0x30] sm:$0xff] %v1671
          %1712 = vst [vmem:[%s383 + $0x38] sm:$0xff] %v1672
          %1713 = vst [vmem:[%s383 + $0x40] sm:$0xff] %v1673
          %1714 = vst [vmem:[%s383 + $0x48] sm:$0xff] %v1674
          %1715 = vst [vmem:[%s383 + $0x50] sm:$0xff] %v1675
          %1716 = vst [vmem:[%s383 + $0x58] sm:$0xff] %v1676
          %1717 = vst [vmem:[%s383 + $0x60] sm:$0xff] %v1677
          %1718 = vst [vmem:[%s383 + $0x68] sm:$0xff] %v1678
          %1719 = vst [vmem:[%s383 + $0x70] sm:$0xff] %v1679
          %1720 = vst [vmem:[%s383 + $0x78] sm:$0xff] %v1680
          %1721 = vst [vmem:[%s383 + $0x80] sm:$0xff] %v1681
          %1722 = vst [vmem:[%s383 + $0x88] sm:$0xff] %v1682
          %1723 = vst [vmem:[%s383 + $0x90] sm:$0xff] %v1683
          %1724 = vst [vmem:[%s383 + $0x98] sm:$0xff] %v1684
          %1725 = vst [vmem:[%s383 + $0xa0] sm:$0xff] %v1685
          %1726 = vst [vmem:[%s383 + $0xa8] sm:$0xff] %v1686
          %1727 = vst [vmem:[%s383 + $0xb0] sm:$0xff] %v1687
          %1728 = vst [vmem:[%s383 + $0xb8] sm:$0xff] %v1688
          %1729 = vst [vmem:[%s383 + $0xc0] sm:$0xff] %v1689
          %1730 = vst [vmem:[%s383 + $0xc8] sm:$0xff] %v1690
          %1731 = vst [vmem:[%s383 + $0xd0] sm:$0xff] %v1691
          %1732 = vst [vmem:[%s383 + $0xd8] sm:$0xff] %v1692
          %1733 = vst [vmem:[%s383 + $0xe0] sm:$0xff] %v1693
          %1734 = vst [vmem:[%s383 + $0xe8] sm:$0xff] %v1694
          %1735 = vst [vmem:[%s383 + $0xf0] sm:$0xff] %v1695
          %1736 = vst [vmem:[%s383 + $0xf8] sm:$0xff] %v1696
          %1737 = vst [vmem:[%s383 + $0x100] sm:$0xff] %v1697
          %1738 = vst [vmem:[%s383 + $0x108] sm:$0xff] %v1698
          %1739 = vst [vmem:[%s383 + $0x110] sm:$0xff] %v1699
          %1740 = vst [vmem:[%s383 + $0x118] sm:$0xff] %v1700
          %1741 = vst [vmem:[%s383 + $0x120] sm:$0xff] %v1701
          %1742 = vst [vmem:[%s383 + $0x128] sm:$0xff] %v1702
          %1743 = vst [vmem:[%s383 + $0x130] sm:$0xff] %v1703
          %1744 = vst [vmem:[%s383 + $0x138] sm:$0xff] %v1704
        $region72: #{tpu_custom_call.1} parent=47 // pred_fallthru
          _
        %s1745 = sand.u32 %s208, 1
        %s1746 = scalar_lea.sflag [#allocation5], %s1745
        %s1747 = sand.u32 %s208, 1
        %s1748 = smul.addr %s1747, 320
        %s1749 = scalar_lea.vmem [#allocation11], %s1748
        // Predicated region
        $region73: #{tpu_custom_call.1} parent=47 // pred_check
          %p1750 = pneg %p218
        $region74: #{tpu_custom_call.1} parent=47 // pred_check_branch
          %1752 = sbr.rel (%p1750) target = $region76
        $region75: #{tpu_custom_call.1} parent=47 // pred_region
          %s1753 = smul.u32 40, %s30
          %1755 = vsyncadd %s1746, 0
          %s1756 = smul.addr %s1753, 8
          %s1757 = scalar_lea.hbm %s7, %s1756
          %s1758 = sshll.u32 %s1749, 4
          %s1759 = int_to_ptr.vmem [resolvable:$true] %s1758
          %s1760 = sshll.u32 %s1757, 4
          %s1761 = int_to_ptr.hbm [resolvable:$true] %s1760
          %1766 = dma.vmem_to_hbm [thread:$0]  %s1759, 5120, %s1761, %s1746, 128, 128, 8
        $region76: #{tpu_custom_call.1} parent=47 // pred_fallthru
          _
      $region48: #{tpu_custom_call.1} parent=5 // pred_fallthru
        _
      %p1767 = scmp.le.s32.totalorder 2, %s21
      // Predicated region
      $region77: #{tpu_custom_call.1} parent=5 // pred_check
        %p1768 = pneg %p1767
      $region78: #{tpu_custom_call.1} parent=5 // pred_check_branch
        %1770 = sbr.rel (%p1768) target = $region80
      $region79: #{tpu_custom_call.1} parent=5 // pred_region
        %s1771 = ssub.s32 %s21, 2
        // Predicated region
        $region81: #{tpu_custom_call.1} parent=79 // pred_check
          %p1772 = pneg %p224
        $region82: #{tpu_custom_call.1} parent=79 // pred_check_branch
          %1774 = sbr.rel (%p1772) target = $region84
        $region83: #{tpu_custom_call.1} parent=79 // pred_region
          %s1775 = sand.u32 %s209, 1
          %s1776 = scalar_lea.sflag [#allocation5], %s1775
          %s1777 = sand.u32 %s209, 1
          %s1778 = smul.addr %s1777, 320
          %s1779 = scalar_lea.vmem [#allocation11], %s1778
          %1781 = dma.done %s1776, 5120
        $region84: #{tpu_custom_call.1} parent=79 // pred_fallthru
          _
      $region80: #{tpu_custom_call.1} parent=5 // pred_fallthru
        _
    $region6: #{tpu_custom_call.1} parent=1 // loop_footer
      %s25 = sadd.s32 1, %s21
    $region7: #{tpu_custom_call.1} parent=1 // loop_footer_branch
      %20 = sbr.rel target = $region3
    $region8: #{tpu_custom_call.1} parent=1 // loop_exit
      _
    %1782 = vsyncpa [#allocation4], 1
    %s1783 = scalar_lea.sflag [#allocation4], 1
    %1784 = vsyncpa %s1783, 1
    %1785 = vsyncpa [#allocation7], 1
    %1786 = vsyncpa [#allocation10], 1
    %1787 = vsyncpa [#allocation5], 1
    %s1788 = scalar_lea.sflag [#allocation5], 1
    %1789 = vsyncpa %s1788, 1

</llo_original>
